<compile_context>
chip_gen: v5e
topology: v5e:2x2
jax: 0.10.0
libtpu: 0.0.40
codegen_flags: <defaults>
</compile_context>

<pallas_src>
import functools

import jax
import jax.numpy as jnp
from jax import lax
from jax.experimental import pallas as pl
from jax.experimental.pallas import tpu as pltpu


def _round_up(x, m):
    return (x + m - 1) // m * m


def _vmem_capacity_bytes():
    """Per-generation VMEM capacity (128 MiB v5e/v6e, 64 MiB per-TC v7x)."""
    try:
        return int(pltpu.get_tpu_info().vmem_capacity_bytes)
    except Exception:
        return 64 * 1024 * 1024  # most conservative generation (v7x)


def _pick_batch_tile(B, T, D, budget_bytes):
    """Largest multiple-of-8 batch tile that fits the VMEM budget (<= 256)."""
    # Per batch row (f32): x block double-buffered (2*T*D) + gates scratch
    # (T*4D) + hseq output double-buffered (2*T*D).
    per_row = 4 * T * (2 * D + 4 * D + 2 * D)
    fixed = 2 * (2 * D * 4 * D * 4) + 4 * 4 * D        # W_ih/W_hh (dbl-buf) + bias
    avail = max(budget_bytes - fixed, per_row * 8)
    bt = int(min(256, max(8, (avail // per_row) // 8 * 8)))
    b8 = _round_up(B, 8)
    bt = min(bt, b8)
    # v7x megacore: prefer >= 2 batch tiles when the batch allows it, so the
    # "parallel" grid axis can shard across both TensorCores.
    if b8 >= 16 and b8 <= bt:
        bt = _round_up(-(-b8 // 2), 8)
    return bt


def lstm_layer_kernel(x_ref, wih_ref, whh_ref, bias_ref, out_ref, gates_ref,
                      *, last_only):
    """One LSTM layer (input projection + recurrence) for one batch tile.

    x_ref     : (T, Bt, D)   layer input, time-major
    wih_ref   : (D, 4D)      input weights (pre-transposed)
    whh_ref   : (D, 4D)      recurrent weights (pre-transposed)
    bias_ref  : (1, 4D)      b_ih + b_hh
    out_ref   : (T, Bt, D)   per-step hidden states   (last_only=False)
                (Bt, D)      last-step hidden state    (last_only=True)
    gates_ref : (T, Bt, 4D)  VMEM scratch for the precomputed input gates
    """
    T, Bt, D = x_ref.shape

    # ---- Parallel part: one big MXU matmul (M = T*Bt) into VMEM scratch ----
    # (Bt % 8 == 0, so the (T, Bt, D) -> (T*Bt, D) reshape is layout-free.)
    x_flat = x_ref[...].reshape(T * Bt, D)
    gates = jnp.dot(x_flat, wih_ref[...], preferred_element_type=jnp.float32)
    gates_ref[...] = (gates + bias_ref[...]).reshape(T, Bt, 4 * D)

    whh = whh_ref[...]                                 # resident across the loop

    # All four gate nonlinearities as ONE lane-dense tanh over the 4D slab:
    #   sigmoid(x) = 0.5 * tanh(0.5 * x) + 0.5   (i, f, o gates)
    #   tanh(x)                                  (g gate)
    one = jnp.ones((1, D), jnp.float32)
    half = jnp.full((1, D), 0.5, jnp.float32)
    zero = jnp.zeros((1, D), jnp.float32)
    pre = jnp.concatenate([half, half, one, half], axis=1)      # (1, 4D)
    post_m = jnp.concatenate([half, half, one, half], axis=1)   # (1, 4D)
    post_a = jnp.concatenate([half, half, zero, half], axis=1)  # (1, 4D)

    h0 = jnp.zeros((Bt, D), jnp.float32)
    c0 = jnp.zeros((Bt, D), jnp.float32)

    def step(t, carry):
        h, c = carry
        # Only the recurrent matmul lives inside the serial loop.
        g = gates_ref[t] + jnp.dot(h, whh, preferred_element_type=jnp.float32)
        a = jnp.tanh(g * pre) * post_m + post_a        # single EUP push, lane dense
        i = a[:, 0:D]
        f = a[:, D:2 * D]
        gg = a[:, 2 * D:3 * D]
        o = a[:, 3 * D:4 * D]
        c_new = f * c + i * gg
        h_new = o * jnp.tanh(c_new)
        if not last_only:
            out_ref[t] = h_new
        return (h_new, c_new)

    # Fully unroll only short fixed recurrences; partial unroll otherwise so big
    # (Bt, T) tiles don't blow up code size / live ranges.
    unroll = True if T <= 16 else 4
    h_last, _ = lax.fori_loop(0, T, step, (h0, c0), unroll=unroll)

    if last_only:
        out_ref[...] = h_last


def _lstm_layer(x_tm, wih_t, whh_t, bias, batch_tile, vmem_limit_bytes,
                last_only):
    """Run one layer over the (padded) batch via a parallel batch grid."""
    T, Bp, D = x_tm.shape
    grid = (Bp // batch_tile,)
    if last_only:
        out_shape = jax.ShapeDtypeStruct((Bp, D), jnp.float32)
        out_spec = pl.BlockSpec((batch_tile, D), lambda i: (i, 0))
    else:
        out_shape = jax.ShapeDtypeStruct((T, Bp, D), jnp.float32)
        out_spec = pl.BlockSpec((T, batch_tile, D), lambda i: (0, i, 0))
    return pl.pallas_call(
        functools.partial(lstm_layer_kernel, last_only=last_only),
        out_shape=out_shape,
        grid=grid,
        in_specs=[
            pl.BlockSpec((T, batch_tile, D), lambda i: (0, i, 0)),
            # Constant index_maps: weights/bias stay resident across grid steps.
            pl.BlockSpec((D, 4 * D), lambda i: (0, 0)),
            pl.BlockSpec((D, 4 * D), lambda i: (0, 0)),
            pl.BlockSpec((1, 4 * D), lambda i: (0, 0)),
        ],
        out_specs=out_spec,
        scratch_shapes=[pltpu.VMEM((T, batch_tile, 4 * D), jnp.float32)],
        compiler_params=pltpu.CompilerParams(
            dimension_semantics=("parallel",),
            vmem_limit_bytes=vmem_limit_bytes,
        ),
    )(x_tm, wih_t, whh_t, bias)


@jax.jit
def discourse_encoder_forward(sent_encoding, params):
    """sent_encoding: (B, T, D) with D = 2*hidden_dim. Returns (B, D)."""
    # TODO(synk): nn.Dropout (input + inter-layer LSTM dropout) is the eval-mode
    # identity here; training-mode dropout masks are not implemented.
    x = sent_encoding.astype(jnp.float32)
    B, T, D = x.shape
    L = params["w_ih"].shape[0]

    cap = _vmem_capacity_bytes()                      # 128 MiB v5e/v6e, 64 MiB v7x
    vmem_limit = min(cap // 2, 64 * 1024 * 1024)
    batch_tile = _pick_batch_tile(B, T, D, int(vmem_limit * 0.75))
    B_pad = _round_up(B, batch_tile)

    # Time-major once; pad the batch to a whole number of fixed tiles (padded
    # rows are independent of real rows and sliced away at the end).
    x_tm = jnp.transpose(x, (1, 0, 2))                # (T, B, D)
    if B_pad != B:
        x_tm = jnp.pad(x_tm, ((0, 0), (0, B_pad - B), (0, 0)))

    h = x_tm
    for l in range(L):
        wih_t = jnp.transpose(params["w_ih"][l])      # (D, 4D)
        whh_t = jnp.transpose(params["w_hh"][l])      # (D, 4D)
        bias = (params["b_ih"][l] + params["b_hh"][l]).reshape(1, 4 * D)
        h = _lstm_layer(h, wih_t, whh_t, bias, batch_tile, vmem_limit,
                        last_only=(l == L - 1))
    return h[:B]                                      # == PyTorch out[:, -1, :]


def init_params(key, D, num_layers):
    """Deterministic synthetic parameters with PyTorch nn.LSTM shapes, stacked
    over layers (input_size == hidden_size == D for every layer here)."""
    ks = jax.random.split(key, 4)
    s = 0.1
    return {
        "w_ih": jax.random.normal(ks[0], (num_layers, 4 * D, D), jnp.float32) * s,
        "w_hh": jax.random.normal(ks[1], (num_layers, 4 * D, D), jnp.float32) * s,
        "b_ih": jax.random.normal(ks[2], (num_layers, 4 * D), jnp.float32) * s,
        "b_hh": jax.random.normal(ks[3], (num_layers, 4 * D), jnp.float32) * s,
    }


def reference_forward(x, params):
    """Pure-JAX reference of the PyTorch forward pass (eval mode)."""
    B, T, D = x.shape
    L = params["w_ih"].shape[0]
    hp = lax.Precision.HIGHEST

    inp = x
    for l in range(L):
        wih = params["w_ih"][l]
        whh = params["w_hh"][l]
        b = params["b_ih"][l] + params["b_hh"][l]
        h = jnp.zeros((B, D), jnp.float32)
        c = jnp.zeros((B, D), jnp.float32)
        outs = []
        for t in range(T):
            g = (jnp.dot(inp[:, t], wih.T, precision=hp)
                 + jnp.dot(h, whh.T, precision=hp) + b)
            i = jax.nn.sigmoid(g[:, :D])
            f = jax.nn.sigmoid(g[:, D:2 * D])
            gg = jnp.tanh(g[:, 2 * D:3 * D])
            o = jax.nn.sigmoid(g[:, 3 * D:])
            c = f * c + i * gg
            h = o * jnp.tanh(c)
            outs.append(h)
        inp = jnp.stack(outs, axis=1)                 # (B, T, D)
    return inp[:, -1, :]


if __name__ == "__main__":
    hidden_dim, num_layers = 32, 2
    B, T = 2, 8
    D = 2 * hidden_dim                                # LSTM(2H, 2H, num_layers)

    key = jax.random.PRNGKey(0)
    kx, kp = jax.random.split(key)
    sent_encoding = jax.random.normal(kx, (B, T, D), jnp.float32)
    params = init_params(kp, D, num_layers)

    out = discourse_encoder_forward(sent_encoding, params)
    out = jax.block_until_ready(out)

    ref = reference_forward(sent_encoding, params)
    assert out.shape == (B, D), out.shape
    # Tolerance: the kernel runs both matmuls with default MXU f32 passes (the
    # perf review asked to drop Precision.HIGHEST), while the reference uses
    # HIGHEST; observed error is well below this bound at these sizes.
    max_err = jnp.max(jnp.abs(out - ref))
    assert jnp.allclose(out, ref, atol=1e-2, rtol=1e-2), (
        f"kernel/reference mismatch, max|err|={max_err}")

    print("KERNEL_OK")
</pallas_src>

<mosaic_0001>
module attributes {stable_mosaic.version = 11 : i64} {
  func.func @lstm_layer_kernel(%arg0: i32, %arg1: memref<8x8x64xf32, #tpu.memory_space<vmem>>, %arg2: memref<64x256xf32, #tpu.memory_space<vmem>>, %arg3: memref<64x256xf32, #tpu.memory_space<vmem>>, %arg4: memref<1x256xf32, #tpu.memory_space<vmem>>, %arg5: memref<8x64xf32, #tpu.memory_space<vmem>>, %arg6: memref<8x8x256xf32, #tpu.memory_space<vmem>>) attributes {dimension_semantics = [#tpu.dimension_semantics<parallel>], iteration_bounds = array<i64: 1>, scalar_prefetch = 0 : i64, scratch_operands = 1 : i64, tpu.core_type = #tpu.core_type<tc>, window_params = [{transform_indices = @transform_0, window_bounds = array<i64: 8, 8, 64>}, {pipeline_mode = #tpu.pipeline_mode<synchronous>, transform_indices = @transform_1, window_bounds = array<i64: 64, 256>}, {pipeline_mode = #tpu.pipeline_mode<synchronous>, transform_indices = @transform_2, window_bounds = array<i64: 64, 256>}, {pipeline_mode = #tpu.pipeline_mode<synchronous>, transform_indices = @transform_3, window_bounds = array<i64: 1, 256>}, {transform_indices = @transform_4, window_bounds = array<i64: 8, 64>}]} {
    %c0 = arith.constant 0 : index
    %c0_0 = arith.constant 0 : index
    %c0_1 = arith.constant 0 : index
    %0 = vector.load %arg1[%c0, %c0_0, %c0_1] : memref<8x8x64xf32, #tpu.memory_space<vmem>>, vector<8x8x64xf32>
    %1 = vector.shape_cast %0 : vector<8x8x64xf32> to vector<64x64xf32>
    %c0_2 = arith.constant 0 : index
    %c0_3 = arith.constant 0 : index
    %2 = vector.load %arg2[%c0_2, %c0_3] : memref<64x256xf32, #tpu.memory_space<vmem>>, vector<64x256xf32>
    %cst = arith.constant dense<0.000000e+00> : vector<64x256xf32>
    %3 = tpu.matmul %1, %2, %cst {dimension_numbers = #tpu.dot_dimension_numbers<[1], [0], [0], [1], [0, 0, 1, 1], [], []>} : vector<64x64xf32>, vector<64x256xf32>, vector<64x256xf32> -> vector<64x256xf32>
    %c0_4 = arith.constant 0 : index
    %c0_5 = arith.constant 0 : index
    %4 = vector.load %arg4[%c0_4, %c0_5] : memref<1x256xf32, #tpu.memory_space<vmem>>, vector<1x256xf32>
    %5 = vector.broadcast %4 : vector<1x256xf32> to vector<64x256xf32>
    %6 = arith.addf %3, %5 : vector<64x256xf32>
    %7 = vector.shape_cast %6 : vector<64x256xf32> to vector<8x8x256xf32>
    %c0_6 = arith.constant 0 : index
    %c0_7 = arith.constant 0 : index
    %c0_8 = arith.constant 0 : index
    %8 = vector.load %arg6[%c0_6, %c0_7, %c0_8] : memref<8x8x256xf32, #tpu.memory_space<vmem>>, vector<8x8x256xf32>
    tpu.vector_store %arg6[%c0_6, %c0_7, %c0_8], %7 {strides = array<i32>} : memref<8x8x256xf32, #tpu.memory_space<vmem>>, vector<8x8x256xf32>,
    %c0_9 = arith.constant 0 : index
    %c0_10 = arith.constant 0 : index
    %9 = vector.load %arg3[%c0_9, %c0_10] : memref<64x256xf32, #tpu.memory_space<vmem>>, vector<64x256xf32>
    %cst_11 = arith.constant 1.000000e+00 : f32
    %10 = vector.broadcast %cst_11 : f32 to vector<1x64xf32>
    %cst_12 = arith.constant 5.000000e-01 : f32
    %11 = vector.broadcast %cst_12 : f32 to vector<1x64xf32>
    %cst_13 = arith.constant 0.000000e+00 : f32
    %12 = vector.broadcast %cst_13 : f32 to vector<1x64xf32>
    %13 = tpu.concatenate %11, %11, %10, %11 in 1 : vector<1x64xf32>, vector<1x64xf32>, vector<1x64xf32>, vector<1x64xf32> -> vector<1x256xf32>
    %14 = tpu.concatenate %11, %11, %10, %11 in 1 : vector<1x64xf32>, vector<1x64xf32>, vector<1x64xf32>, vector<1x64xf32> -> vector<1x256xf32>
    %15 = tpu.concatenate %11, %11, %12, %11 in 1 : vector<1x64xf32>, vector<1x64xf32>, vector<1x64xf32>, vector<1x64xf32> -> vector<1x256xf32>
    %cst_14 = arith.constant 0.000000e+00 : f32
    %16 = vector.broadcast %cst_14 : f32 to vector<8x64xf32>
    %cst_15 = arith.constant 0.000000e+00 : f32
    %17 = vector.broadcast %cst_15 : f32 to vector<8x64xf32>
    %c0_i32 = arith.constant 0 : i32
    %18 = arith.index_cast %c0_i32 : i32 to index
    %c0_16 = arith.constant 0 : index
    %c0_17 = arith.constant 0 : index
    %19 = vector.load %arg6[%18, %c0_16, %c0_17] : memref<8x8x256xf32, #tpu.memory_space<vmem>>, vector<1x8x256xf32>
    %20 = vector.shape_cast %19 : vector<1x8x256xf32> to vector<8x256xf32>
    %cst_18 = arith.constant dense<0.000000e+00> : vector<8x256xf32>
    %21 = tpu.matmul %16, %9, %cst_18 {dimension_numbers = #tpu.dot_dimension_numbers<[1], [0], [0], [1], [0, 0, 1, 1], [], []>} : vector<8x64xf32>, vector<64x256xf32>, vector<8x256xf32> -> vector<8x256xf32>
    %22 = arith.addf %20, %21 : vector<8x256xf32>
    %23 = vector.broadcast %13 : vector<1x256xf32> to vector<8x256xf32>
    %24 = arith.mulf %22, %23 : vector<8x256xf32>
    %25 = math.tanh %24 : vector<8x256xf32>
    %26 = vector.broadcast %14 : vector<1x256xf32> to vector<8x256xf32>
    %27 = arith.mulf %25, %26 : vector<8x256xf32>
    %28 = vector.broadcast %15 : vector<1x256xf32> to vector<8x256xf32>
    %29 = arith.addf %27, %28 : vector<8x256xf32>
    %30 = vector.extract_strided_slice %29 {offsets = [0, 0], sizes = [8, 64], strides = [1, 1]} : vector<8x256xf32> to vector<8x64xf32>
    %31 = vector.extract_strided_slice %29 {offsets = [0, 64], sizes = [8, 64], strides = [1, 1]} : vector<8x256xf32> to vector<8x64xf32>
    %32 = vector.extract_strided_slice %29 {offsets = [0, 128], sizes = [8, 64], strides = [1, 1]} : vector<8x256xf32> to vector<8x64xf32>
    %33 = vector.extract_strided_slice %29 {offsets = [0, 192], sizes = [8, 64], strides = [1, 1]} : vector<8x256xf32> to vector<8x64xf32>
    %34 = arith.mulf %31, %17 : vector<8x64xf32>
    %35 = arith.mulf %30, %32 : vector<8x64xf32>
    %36 = arith.addf %34, %35 : vector<8x64xf32>
    %37 = math.tanh %36 : vector<8x64xf32>
    %38 = arith.mulf %33, %37 : vector<8x64xf32>
    %c1_i32 = arith.constant 1 : i32
    %39 = arith.index_cast %c1_i32 : i32 to index
    %c0_19 = arith.constant 0 : index
    %c0_20 = arith.constant 0 : index
    %40 = vector.load %arg6[%39, %c0_19, %c0_20] : memref<8x8x256xf32, #tpu.memory_space<vmem>>, vector<1x8x256xf32>
    %41 = vector.shape_cast %40 : vector<1x8x256xf32> to vector<8x256xf32>
    %cst_21 = arith.constant dense<0.000000e+00> : vector<8x256xf32>
    %42 = tpu.matmul %38, %9, %cst_21 {dimension_numbers = #tpu.dot_dimension_numbers<[1], [0], [0], [1], [0, 0, 1, 1], [], []>} : vector<8x64xf32>, vector<64x256xf32>, vector<8x256xf32> -> vector<8x256xf32>
    %43 = arith.addf %41, %42 : vector<8x256xf32>
    %44 = vector.broadcast %13 : vector<1x256xf32> to vector<8x256xf32>
    %45 = arith.mulf %43, %44 : vector<8x256xf32>
    %46 = math.tanh %45 : vector<8x256xf32>
    %47 = vector.broadcast %14 : vector<1x256xf32> to vector<8x256xf32>
    %48 = arith.mulf %46, %47 : vector<8x256xf32>
    %49 = vector.broadcast %15 : vector<1x256xf32> to vector<8x256xf32>
    %50 = arith.addf %48, %49 : vector<8x256xf32>
    %51 = vector.extract_strided_slice %50 {offsets = [0, 0], sizes = [8, 64], strides = [1, 1]} : vector<8x256xf32> to vector<8x64xf32>
    %52 = vector.extract_strided_slice %50 {offsets = [0, 64], sizes = [8, 64], strides = [1, 1]} : vector<8x256xf32> to vector<8x64xf32>
    %53 = vector.extract_strided_slice %50 {offsets = [0, 128], sizes = [8, 64], strides = [1, 1]} : vector<8x256xf32> to vector<8x64xf32>
    %54 = vector.extract_strided_slice %50 {offsets = [0, 192], sizes = [8, 64], strides = [1, 1]} : vector<8x256xf32> to vector<8x64xf32>
    %55 = arith.mulf %52, %36 : vector<8x64xf32>
    %56 = arith.mulf %51, %53 : vector<8x64xf32>
    %57 = arith.addf %55, %56 : vector<8x64xf32>
    %58 = math.tanh %57 : vector<8x64xf32>
    %59 = arith.mulf %54, %58 : vector<8x64xf32>
    %c2_i32 = arith.constant 2 : i32
    %60 = arith.index_cast %c2_i32 : i32 to index
    %c0_22 = arith.constant 0 : index
    %c0_23 = arith.constant 0 : index
    %61 = vector.load %arg6[%60, %c0_22, %c0_23] : memref<8x8x256xf32, #tpu.memory_space<vmem>>, vector<1x8x256xf32>
    %62 = vector.shape_cast %61 : vector<1x8x256xf32> to vector<8x256xf32>
    %cst_24 = arith.constant dense<0.000000e+00> : vector<8x256xf32>
    %63 = tpu.matmul %59, %9, %cst_24 {dimension_numbers = #tpu.dot_dimension_numbers<[1], [0], [0], [1], [0, 0, 1, 1], [], []>} : vector<8x64xf32>, vector<64x256xf32>, vector<8x256xf32> -> vector<8x256xf32>
    %64 = arith.addf %62, %63 : vector<8x256xf32>
    %65 = vector.broadcast %13 : vector<1x256xf32> to vector<8x256xf32>
    %66 = arith.mulf %64, %65 : vector<8x256xf32>
    %67 = math.tanh %66 : vector<8x256xf32>
    %68 = vector.broadcast %14 : vector<1x256xf32> to vector<8x256xf32>
    %69 = arith.mulf %67, %68 : vector<8x256xf32>
    %70 = vector.broadcast %15 : vector<1x256xf32> to vector<8x256xf32>
    %71 = arith.addf %69, %70 : vector<8x256xf32>
    %72 = vector.extract_strided_slice %71 {offsets = [0, 0], sizes = [8, 64], strides = [1, 1]} : vector<8x256xf32> to vector<8x64xf32>
    %73 = vector.extract_strided_slice %71 {offsets = [0, 64], sizes = [8, 64], strides = [1, 1]} : vector<8x256xf32> to vector<8x64xf32>
    %74 = vector.extract_strided_slice %71 {offsets = [0, 128], sizes = [8, 64], strides = [1, 1]} : vector<8x256xf32> to vector<8x64xf32>
    %75 = vector.extract_strided_slice %71 {offsets = [0, 192], sizes = [8, 64], strides = [1, 1]} : vector<8x256xf32> to vector<8x64xf32>
    %76 = arith.mulf %73, %57 : vector<8x64xf32>
    %77 = arith.mulf %72, %74 : vector<8x64xf32>
    %78 = arith.addf %76, %77 : vector<8x64xf32>
    %79 = math.tanh %78 : vector<8x64xf32>
    %80 = arith.mulf %75, %79 : vector<8x64xf32>
    %c3_i32 = arith.constant 3 : i32
    %81 = arith.index_cast %c3_i32 : i32 to index
    %c0_25 = arith.constant 0 : index
    %c0_26 = arith.constant 0 : index
    %82 = vector.load %arg6[%81, %c0_25, %c0_26] : memref<8x8x256xf32, #tpu.memory_space<vmem>>, vector<1x8x256xf32>
    %83 = vector.shape_cast %82 : vector<1x8x256xf32> to vector<8x256xf32>
    %cst_27 = arith.constant dense<0.000000e+00> : vector<8x256xf32>
    %84 = tpu.matmul %80, %9, %cst_27 {dimension_numbers = #tpu.dot_dimension_numbers<[1], [0], [0], [1], [0, 0, 1, 1], [], []>} : vector<8x64xf32>, vector<64x256xf32>, vector<8x256xf32> -> vector<8x256xf32>
    %85 = arith.addf %83, %84 : vector<8x256xf32>
    %86 = vector.broadcast %13 : vector<1x256xf32> to vector<8x256xf32>
    %87 = arith.mulf %85, %86 : vector<8x256xf32>
    %88 = math.tanh %87 : vector<8x256xf32>
    %89 = vector.broadcast %14 : vector<1x256xf32> to vector<8x256xf32>
    %90 = arith.mulf %88, %89 : vector<8x256xf32>
    %91 = vector.broadcast %15 : vector<1x256xf32> to vector<8x256xf32>
    %92 = arith.addf %90, %91 : vector<8x256xf32>
    %93 = vector.extract_strided_slice %92 {offsets = [0, 0], sizes = [8, 64], strides = [1, 1]} : vector<8x256xf32> to vector<8x64xf32>
    %94 = vector.extract_strided_slice %92 {offsets = [0, 64], sizes = [8, 64], strides = [1, 1]} : vector<8x256xf32> to vector<8x64xf32>
    %95 = vector.extract_strided_slice %92 {offsets = [0, 128], sizes = [8, 64], strides = [1, 1]} : vector<8x256xf32> to vector<8x64xf32>
    %96 = vector.extract_strided_slice %92 {offsets = [0, 192], sizes = [8, 64], strides = [1, 1]} : vector<8x256xf32> to vector<8x64xf32>
    %97 = arith.mulf %94, %78 : vector<8x64xf32>
    %98 = arith.mulf %93, %95 : vector<8x64xf32>
    %99 = arith.addf %97, %98 : vector<8x64xf32>
    %100 = math.tanh %99 : vector<8x64xf32>
    %101 = arith.mulf %96, %100 : vector<8x64xf32>
    %c4_i32 = arith.constant 4 : i32
    %102 = arith.index_cast %c4_i32 : i32 to index
    %c0_28 = arith.constant 0 : index
    %c0_29 = arith.constant 0 : index
    %103 = vector.load %arg6[%102, %c0_28, %c0_29] : memref<8x8x256xf32, #tpu.memory_space<vmem>>, vector<1x8x256xf32>
    %104 = vector.shape_cast %103 : vector<1x8x256xf32> to vector<8x256xf32>
    %cst_30 = arith.constant dense<0.000000e+00> : vector<8x256xf32>
    %105 = tpu.matmul %101, %9, %cst_30 {dimension_numbers = #tpu.dot_dimension_numbers<[1], [0], [0], [1], [0, 0, 1, 1], [], []>} : vector<8x64xf32>, vector<64x256xf32>, vector<8x256xf32> -> vector<8x256xf32>
    %106 = arith.addf %104, %105 : vector<8x256xf32>
    %107 = vector.broadcast %13 : vector<1x256xf32> to vector<8x256xf32>
    %108 = arith.mulf %106, %107 : vector<8x256xf32>
    %109 = math.tanh %108 : vector<8x256xf32>
    %110 = vector.broadcast %14 : vector<1x256xf32> to vector<8x256xf32>
    %111 = arith.mulf %109, %110 : vector<8x256xf32>
    %112 = vector.broadcast %15 : vector<1x256xf32> to vector<8x256xf32>
    %113 = arith.addf %111, %112 : vector<8x256xf32>
    %114 = vector.extract_strided_slice %113 {offsets = [0, 0], sizes = [8, 64], strides = [1, 1]} : vector<8x256xf32> to vector<8x64xf32>
    %115 = vector.extract_strided_slice %113 {offsets = [0, 64], sizes = [8, 64], strides = [1, 1]} : vector<8x256xf32> to vector<8x64xf32>
    %116 = vector.extract_strided_slice %113 {offsets = [0, 128], sizes = [8, 64], strides = [1, 1]} : vector<8x256xf32> to vector<8x64xf32>
    %117 = vector.extract_strided_slice %113 {offsets = [0, 192], sizes = [8, 64], strides = [1, 1]} : vector<8x256xf32> to vector<8x64xf32>
    %118 = arith.mulf %115, %99 : vector<8x64xf32>
    %119 = arith.mulf %114, %116 : vector<8x64xf32>
    %120 = arith.addf %118, %119 : vector<8x64xf32>
    %121 = math.tanh %120 : vector<8x64xf32>
    %122 = arith.mulf %117, %121 : vector<8x64xf32>
    %c5_i32 = arith.constant 5 : i32
    %123 = arith.index_cast %c5_i32 : i32 to index
    %c0_31 = arith.constant 0 : index
    %c0_32 = arith.constant 0 : index
    %124 = vector.load %arg6[%123, %c0_31, %c0_32] : memref<8x8x256xf32, #tpu.memory_space<vmem>>, vector<1x8x256xf32>
    %125 = vector.shape_cast %124 : vector<1x8x256xf32> to vector<8x256xf32>
    %cst_33 = arith.constant dense<0.000000e+00> : vector<8x256xf32>
    %126 = tpu.matmul %122, %9, %cst_33 {dimension_numbers = #tpu.dot_dimension_numbers<[1], [0], [0], [1], [0, 0, 1, 1], [], []>} : vector<8x64xf32>, vector<64x256xf32>, vector<8x256xf32> -> vector<8x256xf32>
    %127 = arith.addf %125, %126 : vector<8x256xf32>
    %128 = vector.broadcast %13 : vector<1x256xf32> to vector<8x256xf32>
    %129 = arith.mulf %127, %128 : vector<8x256xf32>
    %130 = math.tanh %129 : vector<8x256xf32>
    %131 = vector.broadcast %14 : vector<1x256xf32> to vector<8x256xf32>
    %132 = arith.mulf %130, %131 : vector<8x256xf32>
    %133 = vector.broadcast %15 : vector<1x256xf32> to vector<8x256xf32>
    %134 = arith.addf %132, %133 : vector<8x256xf32>
    %135 = vector.extract_strided_slice %134 {offsets = [0, 0], sizes = [8, 64], strides = [1, 1]} : vector<8x256xf32> to vector<8x64xf32>
    %136 = vector.extract_strided_slice %134 {offsets = [0, 64], sizes = [8, 64], strides = [1, 1]} : vector<8x256xf32> to vector<8x64xf32>
    %137 = vector.extract_strided_slice %134 {offsets = [0, 128], sizes = [8, 64], strides = [1, 1]} : vector<8x256xf32> to vector<8x64xf32>
    %138 = vector.extract_strided_slice %134 {offsets = [0, 192], sizes = [8, 64], strides = [1, 1]} : vector<8x256xf32> to vector<8x64xf32>
    %139 = arith.mulf %136, %120 : vector<8x64xf32>
    %140 = arith.mulf %135, %137 : vector<8x64xf32>
    %141 = arith.addf %139, %140 : vector<8x64xf32>
    %142 = math.tanh %141 : vector<8x64xf32>
    %143 = arith.mulf %138, %142 : vector<8x64xf32>
    %c6_i32 = arith.constant 6 : i32
    %144 = arith.index_cast %c6_i32 : i32 to index
    %c0_34 = arith.constant 0 : index
    %c0_35 = arith.constant 0 : index
    %145 = vector.load %arg6[%144, %c0_34, %c0_35] : memref<8x8x256xf32, #tpu.memory_space<vmem>>, vector<1x8x256xf32>
    %146 = vector.shape_cast %145 : vector<1x8x256xf32> to vector<8x256xf32>
    %cst_36 = arith.constant dense<0.000000e+00> : vector<8x256xf32>
    %147 = tpu.matmul %143, %9, %cst_36 {dimension_numbers = #tpu.dot_dimension_numbers<[1], [0], [0], [1], [0, 0, 1, 1], [], []>} : vector<8x64xf32>, vector<64x256xf32>, vector<8x256xf32> -> vector<8x256xf32>
    %148 = arith.addf %146, %147 : vector<8x256xf32>
    %149 = vector.broadcast %13 : vector<1x256xf32> to vector<8x256xf32>
    %150 = arith.mulf %148, %149 : vector<8x256xf32>
    %151 = math.tanh %150 : vector<8x256xf32>
    %152 = vector.broadcast %14 : vector<1x256xf32> to vector<8x256xf32>
    %153 = arith.mulf %151, %152 : vector<8x256xf32>
    %154 = vector.broadcast %15 : vector<1x256xf32> to vector<8x256xf32>
    %155 = arith.addf %153, %154 : vector<8x256xf32>
    %156 = vector.extract_strided_slice %155 {offsets = [0, 0], sizes = [8, 64], strides = [1, 1]} : vector<8x256xf32> to vector<8x64xf32>
    %157 = vector.extract_strided_slice %155 {offsets = [0, 64], sizes = [8, 64], strides = [1, 1]} : vector<8x256xf32> to vector<8x64xf32>
    %158 = vector.extract_strided_slice %155 {offsets = [0, 128], sizes = [8, 64], strides = [1, 1]} : vector<8x256xf32> to vector<8x64xf32>
    %159 = vector.extract_strided_slice %155 {offsets = [0, 192], sizes = [8, 64], strides = [1, 1]} : vector<8x256xf32> to vector<8x64xf32>
    %160 = arith.mulf %157, %141 : vector<8x64xf32>
    %161 = arith.mulf %156, %158 : vector<8x64xf32>
    %162 = arith.addf %160, %161 : vector<8x64xf32>
    %163 = math.tanh %162 : vector<8x64xf32>
    %164 = arith.mulf %159, %163 : vector<8x64xf32>
    %c7_i32 = arith.constant 7 : i32
    %165 = arith.index_cast %c7_i32 : i32 to index
    %c0_37 = arith.constant 0 : index
    %c0_38 = arith.constant 0 : index
    %166 = vector.load %arg6[%165, %c0_37, %c0_38] : memref<8x8x256xf32, #tpu.memory_space<vmem>>, vector<1x8x256xf32>
    %167 = vector.shape_cast %166 : vector<1x8x256xf32> to vector<8x256xf32>
    %cst_39 = arith.constant dense<0.000000e+00> : vector<8x256xf32>
    %168 = tpu.matmul %164, %9, %cst_39 {dimension_numbers = #tpu.dot_dimension_numbers<[1], [0], [0], [1], [0, 0, 1, 1], [], []>} : vector<8x64xf32>, vector<64x256xf32>, vector<8x256xf32> -> vector<8x256xf32>
    %169 = arith.addf %167, %168 : vector<8x256xf32>
    %170 = vector.broadcast %13 : vector<1x256xf32> to vector<8x256xf32>
    %171 = arith.mulf %169, %170 : vector<8x256xf32>
    %172 = math.tanh %171 : vector<8x256xf32>
    %173 = vector.broadcast %14 : vector<1x256xf32> to vector<8x256xf32>
    %174 = arith.mulf %172, %173 : vector<8x256xf32>
    %175 = vector.broadcast %15 : vector<1x256xf32> to vector<8x256xf32>
    %176 = arith.addf %174, %175 : vector<8x256xf32>
    %177 = vector.extract_strided_slice %176 {offsets = [0, 0], sizes = [8, 64], strides = [1, 1]} : vector<8x256xf32> to vector<8x64xf32>
    %178 = vector.extract_strided_slice %176 {offsets = [0, 64], sizes = [8, 64], strides = [1, 1]} : vector<8x256xf32> to vector<8x64xf32>
    %179 = vector.extract_strided_slice %176 {offsets = [0, 128], sizes = [8, 64], strides = [1, 1]} : vector<8x256xf32> to vector<8x64xf32>
    %180 = vector.extract_strided_slice %176 {offsets = [0, 192], sizes = [8, 64], strides = [1, 1]} : vector<8x256xf32> to vector<8x64xf32>
    %181 = arith.mulf %178, %162 : vector<8x64xf32>
    %182 = arith.mulf %177, %179 : vector<8x64xf32>
    %183 = arith.addf %181, %182 : vector<8x64xf32>
    %184 = math.tanh %183 : vector<8x64xf32>
    %185 = arith.mulf %180, %184 : vector<8x64xf32>
    %c8_i32 = arith.constant 8 : i32
    %c0_40 = arith.constant 0 : index
    %c0_41 = arith.constant 0 : index
    %186 = vector.load %arg5[%c0_40, %c0_41] : memref<8x64xf32, #tpu.memory_space<vmem>>, vector<8x64xf32>
    tpu.vector_store %arg5[%c0_40, %c0_41], %185 {strides = array<i32>} : memref<8x64xf32, #tpu.memory_space<vmem>>, vector<8x64xf32>,
    return
  }
  func.func @transform_0(%arg0: i32) -> (i32, i32, i32) {
    %c0_i32 = arith.constant 0 : i32
    %c0_i32_0 = arith.constant 0 : i32
    %c0_i32_1 = arith.constant 0 : i32
    return %c0_i32, %arg0, %c0_i32_0 : i32, i32, i32
  }
  func.func @transform_1(%arg0: i32) -> (i32, i32) {
    %c0_i32 = arith.constant 0 : i32
    %c0_i32_0 = arith.constant 0 : i32
    %c0_i32_1 = arith.constant 0 : i32
    return %c0_i32, %c0_i32_0 : i32, i32
  }
  func.func @transform_2(%arg0: i32) -> (i32, i32) {
    %c0_i32 = arith.constant 0 : i32
    %c0_i32_0 = arith.constant 0 : i32
    %c0_i32_1 = arith.constant 0 : i32
    return %c0_i32, %c0_i32_0 : i32, i32
  }
  func.func @transform_3(%arg0: i32) -> (i32, i32) {
    %c0_i32 = arith.constant 0 : i32
    %c0_i32_0 = arith.constant 0 : i32
    %c0_i32_1 = arith.constant 0 : i32
    return %c0_i32, %c0_i32_0 : i32, i32
  }
  func.func @transform_4(%arg0: i32) -> (i32, i32) {
    %c0_i32 = arith.constant 0 : i32
    %c0_i32_0 = arith.constant 0 : i32
    return %arg0, %c0_i32 : i32, i32
  }
}

module attributes {stable_mosaic.version = 11 : i64} {
  func.func @lstm_layer_kernel(%arg0: i32, %arg1: memref<8x8x64xf32, #tpu.memory_space<vmem>>, %arg2: memref<64x256xf32, #tpu.memory_space<vmem>>, %arg3: memref<64x256xf32, #tpu.memory_space<vmem>>, %arg4: memref<1x256xf32, #tpu.memory_space<vmem>>, %arg5: memref<8x8x64xf32, #tpu.memory_space<vmem>>, %arg6: memref<8x8x256xf32, #tpu.memory_space<vmem>>) attributes {dimension_semantics = [#tpu.dimension_semantics<parallel>], iteration_bounds = array<i64: 1>, scalar_prefetch = 0 : i64, scratch_operands = 1 : i64, tpu.core_type = #tpu.core_type<tc>, window_params = [{transform_indices = @transform_0, window_bounds = array<i64: 8, 8, 64>}, {pipeline_mode = #tpu.pipeline_mode<synchronous>, transform_indices = @transform_1, window_bounds = array<i64: 64, 256>}, {pipeline_mode = #tpu.pipeline_mode<synchronous>, transform_indices = @transform_2, window_bounds = array<i64: 64, 256>}, {pipeline_mode = #tpu.pipeline_mode<synchronous>, transform_indices = @transform_3, window_bounds = array<i64: 1, 256>}, {transform_indices = @transform_4, window_bounds = array<i64: 8, 8, 64>}]} {
    %c0 = arith.constant 0 : index
    %c0_0 = arith.constant 0 : index
    %c0_1 = arith.constant 0 : index
    %0 = vector.load %arg1[%c0, %c0_0, %c0_1] : memref<8x8x64xf32, #tpu.memory_space<vmem>>, vector<8x8x64xf32>
    %1 = vector.shape_cast %0 : vector<8x8x64xf32> to vector<64x64xf32>
    %c0_2 = arith.constant 0 : index
    %c0_3 = arith.constant 0 : index
    %2 = vector.load %arg2[%c0_2, %c0_3] : memref<64x256xf32, #tpu.memory_space<vmem>>, vector<64x256xf32>
    %cst = arith.constant dense<0.000000e+00> : vector<64x256xf32>
    %3 = tpu.matmul %1, %2, %cst {dimension_numbers = #tpu.dot_dimension_numbers<[1], [0], [0], [1], [0, 0, 1, 1], [], []>} : vector<64x64xf32>, vector<64x256xf32>, vector<64x256xf32> -> vector<64x256xf32>
    %c0_4 = arith.constant 0 : index
    %c0_5 = arith.constant 0 : index
    %4 = vector.load %arg4[%c0_4, %c0_5] : memref<1x256xf32, #tpu.memory_space<vmem>>, vector<1x256xf32>
    %5 = vector.broadcast %4 : vector<1x256xf32> to vector<64x256xf32>
    %6 = arith.addf %3, %5 : vector<64x256xf32>
    %7 = vector.shape_cast %6 : vector<64x256xf32> to vector<8x8x256xf32>
    %c0_6 = arith.constant 0 : index
    %c0_7 = arith.constant 0 : index
    %c0_8 = arith.constant 0 : index
    %8 = vector.load %arg6[%c0_6, %c0_7, %c0_8] : memref<8x8x256xf32, #tpu.memory_space<vmem>>, vector<8x8x256xf32>
    tpu.vector_store %arg6[%c0_6, %c0_7, %c0_8], %7 {strides = array<i32>} : memref<8x8x256xf32, #tpu.memory_space<vmem>>, vector<8x8x256xf32>,
    %c0_9 = arith.constant 0 : index
    %c0_10 = arith.constant 0 : index
    %9 = vector.load %arg3[%c0_9, %c0_10] : memref<64x256xf32, #tpu.memory_space<vmem>>, vector<64x256xf32>
    %cst_11 = arith.constant 1.000000e+00 : f32
    %10 = vector.broadcast %cst_11 : f32 to vector<1x64xf32>
    %cst_12 = arith.constant 5.000000e-01 : f32
    %11 = vector.broadcast %cst_12 : f32 to vector<1x64xf32>
    %cst_13 = arith.constant 0.000000e+00 : f32
    %12 = vector.broadcast %cst_13 : f32 to vector<1x64xf32>
    %13 = tpu.concatenate %11, %11, %10, %11 in 1 : vector<1x64xf32>, vector<1x64xf32>, vector<1x64xf32>, vector<1x64xf32> -> vector<1x256xf32>
    %14 = tpu.concatenate %11, %11, %10, %11 in 1 : vector<1x64xf32>, vector<1x64xf32>, vector<1x64xf32>, vector<1x64xf32> -> vector<1x256xf32>
    %15 = tpu.concatenate %11, %11, %12, %11 in 1 : vector<1x64xf32>, vector<1x64xf32>, vector<1x64xf32>, vector<1x64xf32> -> vector<1x256xf32>
    %cst_14 = arith.constant 0.000000e+00 : f32
    %16 = vector.broadcast %cst_14 : f32 to vector<8x64xf32>
    %cst_15 = arith.constant 0.000000e+00 : f32
    %17 = vector.broadcast %cst_15 : f32 to vector<8x64xf32>
    %c0_i32 = arith.constant 0 : i32
    %18 = arith.index_cast %c0_i32 : i32 to index
    %c0_16 = arith.constant 0 : index
    %c0_17 = arith.constant 0 : index
    %19 = vector.load %arg6[%18, %c0_16, %c0_17] : memref<8x8x256xf32, #tpu.memory_space<vmem>>, vector<1x8x256xf32>
    %20 = vector.shape_cast %19 : vector<1x8x256xf32> to vector<8x256xf32>
    %cst_18 = arith.constant dense<0.000000e+00> : vector<8x256xf32>
    %21 = tpu.matmul %16, %9, %cst_18 {dimension_numbers = #tpu.dot_dimension_numbers<[1], [0], [0], [1], [0, 0, 1, 1], [], []>} : vector<8x64xf32>, vector<64x256xf32>, vector<8x256xf32> -> vector<8x256xf32>
    %22 = arith.addf %20, %21 : vector<8x256xf32>
    %23 = vector.broadcast %13 : vector<1x256xf32> to vector<8x256xf32>
    %24 = arith.mulf %22, %23 : vector<8x256xf32>
    %25 = math.tanh %24 : vector<8x256xf32>
    %26 = vector.broadcast %14 : vector<1x256xf32> to vector<8x256xf32>
    %27 = arith.mulf %25, %26 : vector<8x256xf32>
    %28 = vector.broadcast %15 : vector<1x256xf32> to vector<8x256xf32>
    %29 = arith.addf %27, %28 : vector<8x256xf32>
    %30 = vector.extract_strided_slice %29 {offsets = [0, 0], sizes = [8, 64], strides = [1, 1]} : vector<8x256xf32> to vector<8x64xf32>
    %31 = vector.extract_strided_slice %29 {offsets = [0, 64], sizes = [8, 64], strides = [1, 1]} : vector<8x256xf32> to vector<8x64xf32>
    %32 = vector.extract_strided_slice %29 {offsets = [0, 128], sizes = [8, 64], strides = [1, 1]} : vector<8x256xf32> to vector<8x64xf32>
    %33 = vector.extract_strided_slice %29 {offsets = [0, 192], sizes = [8, 64], strides = [1, 1]} : vector<8x256xf32> to vector<8x64xf32>
    %34 = arith.mulf %31, %17 : vector<8x64xf32>
    %35 = arith.mulf %30, %32 : vector<8x64xf32>
    %36 = arith.addf %34, %35 : vector<8x64xf32>
    %37 = math.tanh %36 : vector<8x64xf32>
    %38 = arith.mulf %33, %37 : vector<8x64xf32>
    %39 = arith.index_cast %c0_i32 : i32 to index
    %c0_19 = arith.constant 0 : index
    %c0_20 = arith.constant 0 : index
    %40 = vector.load %arg5[%39, %c0_19, %c0_20] : memref<8x8x64xf32, #tpu.memory_space<vmem>>, vector<1x8x64xf32>
    %41 = vector.shape_cast %40 : vector<1x8x64xf32> to vector<8x64xf32>
    %42 = vector.shape_cast %38 : vector<8x64xf32> to vector<1x8x64xf32>
    tpu.vector_store %arg5[%39, %c0_19, %c0_20], %42 {strides = array<i32>} : memref<8x8x64xf32, #tpu.memory_space<vmem>>, vector<1x8x64xf32>,
    %c1_i32 = arith.constant 1 : i32
    %43 = arith.index_cast %c1_i32 : i32 to index
    %c0_21 = arith.constant 0 : index
    %c0_22 = arith.constant 0 : index
    %44 = vector.load %arg6[%43, %c0_21, %c0_22] : memref<8x8x256xf32, #tpu.memory_space<vmem>>, vector<1x8x256xf32>
    %45 = vector.shape_cast %44 : vector<1x8x256xf32> to vector<8x256xf32>
    %cst_23 = arith.constant dense<0.000000e+00> : vector<8x256xf32>
    %46 = tpu.matmul %38, %9, %cst_23 {dimension_numbers = #tpu.dot_dimension_numbers<[1], [0], [0], [1], [0, 0, 1, 1], [], []>} : vector<8x64xf32>, vector<64x256xf32>, vector<8x256xf32> -> vector<8x256xf32>
    %47 = arith.addf %45, %46 : vector<8x256xf32>
    %48 = vector.broadcast %13 : vector<1x256xf32> to vector<8x256xf32>
    %49 = arith.mulf %47, %48 : vector<8x256xf32>
    %50 = math.tanh %49 : vector<8x256xf32>
    %51 = vector.broadcast %14 : vector<1x256xf32> to vector<8x256xf32>
    %52 = arith.mulf %50, %51 : vector<8x256xf32>
    %53 = vector.broadcast %15 : vector<1x256xf32> to vector<8x256xf32>
    %54 = arith.addf %52, %53 : vector<8x256xf32>
    %55 = vector.extract_strided_slice %54 {offsets = [0, 0], sizes = [8, 64], strides = [1, 1]} : vector<8x256xf32> to vector<8x64xf32>
    %56 = vector.extract_strided_slice %54 {offsets = [0, 64], sizes = [8, 64], strides = [1, 1]} : vector<8x256xf32> to vector<8x64xf32>
    %57 = vector.extract_strided_slice %54 {offsets = [0, 128], sizes = [8, 64], strides = [1, 1]} : vector<8x256xf32> to vector<8x64xf32>
    %58 = vector.extract_strided_slice %54 {offsets = [0, 192], sizes = [8, 64], strides = [1, 1]} : vector<8x256xf32> to vector<8x64xf32>
    %59 = arith.mulf %56, %36 : vector<8x64xf32>
    %60 = arith.mulf %55, %57 : vector<8x64xf32>
    %61 = arith.addf %59, %60 : vector<8x64xf32>
    %62 = math.tanh %61 : vector<8x64xf32>
    %63 = arith.mulf %58, %62 : vector<8x64xf32>
    %64 = arith.index_cast %c1_i32 : i32 to index
    %c0_24 = arith.constant 0 : index
    %c0_25 = arith.constant 0 : index
    %65 = vector.load %arg5[%64, %c0_24, %c0_25] : memref<8x8x64xf32, #tpu.memory_space<vmem>>, vector<1x8x64xf32>
    %66 = vector.shape_cast %65 : vector<1x8x64xf32> to vector<8x64xf32>
    %67 = vector.shape_cast %63 : vector<8x64xf32> to vector<1x8x64xf32>
    tpu.vector_store %arg5[%64, %c0_24, %c0_25], %67 {strides = array<i32>} : memref<8x8x64xf32, #tpu.memory_space<vmem>>, vector<1x8x64xf32>,
    %c2_i32 = arith.constant 2 : i32
    %68 = arith.index_cast %c2_i32 : i32 to index
    %c0_26 = arith.constant 0 : index
    %c0_27 = arith.constant 0 : index
    %69 = vector.load %arg6[%68, %c0_26, %c0_27] : memref<8x8x256xf32, #tpu.memory_space<vmem>>, vector<1x8x256xf32>
    %70 = vector.shape_cast %69 : vector<1x8x256xf32> to vector<8x256xf32>
    %cst_28 = arith.constant dense<0.000000e+00> : vector<8x256xf32>
    %71 = tpu.matmul %63, %9, %cst_28 {dimension_numbers = #tpu.dot_dimension_numbers<[1], [0], [0], [1], [0, 0, 1, 1], [], []>} : vector<8x64xf32>, vector<64x256xf32>, vector<8x256xf32> -> vector<8x256xf32>
    %72 = arith.addf %70, %71 : vector<8x256xf32>
    %73 = vector.broadcast %13 : vector<1x256xf32> to vector<8x256xf32>
    %74 = arith.mulf %72, %73 : vector<8x256xf32>
    %75 = math.tanh %74 : vector<8x256xf32>
    %76 = vector.broadcast %14 : vector<1x256xf32> to vector<8x256xf32>
    %77 = arith.mulf %75, %76 : vector<8x256xf32>
    %78 = vector.broadcast %15 : vector<1x256xf32> to vector<8x256xf32>
    %79 = arith.addf %77, %78 : vector<8x256xf32>
    %80 = vector.extract_strided_slice %79 {offsets = [0, 0], sizes = [8, 64], strides = [1, 1]} : vector<8x256xf32> to vector<8x64xf32>
    %81 = vector.extract_strided_slice %79 {offsets = [0, 64], sizes = [8, 64], strides = [1, 1]} : vector<8x256xf32> to vector<8x64xf32>
    %82 = vector.extract_strided_slice %79 {offsets = [0, 128], sizes = [8, 64], strides = [1, 1]} : vector<8x256xf32> to vector<8x64xf32>
    %83 = vector.extract_strided_slice %79 {offsets = [0, 192], sizes = [8, 64], strides = [1, 1]} : vector<8x256xf32> to vector<8x64xf32>
    %84 = arith.mulf %81, %61 : vector<8x64xf32>
    %85 = arith.mulf %80, %82 : vector<8x64xf32>
    %86 = arith.addf %84, %85 : vector<8x64xf32>
    %87 = math.tanh %86 : vector<8x64xf32>
    %88 = arith.mulf %83, %87 : vector<8x64xf32>
    %89 = arith.index_cast %c2_i32 : i32 to index
    %c0_29 = arith.constant 0 : index
    %c0_30 = arith.constant 0 : index
    %90 = vector.load %arg5[%89, %c0_29, %c0_30] : memref<8x8x64xf32, #tpu.memory_space<vmem>>, vector<1x8x64xf32>
    %91 = vector.shape_cast %90 : vector<1x8x64xf32> to vector<8x64xf32>
    %92 = vector.shape_cast %88 : vector<8x64xf32> to vector<1x8x64xf32>
    tpu.vector_store %arg5[%89, %c0_29, %c0_30], %92 {strides = array<i32>} : memref<8x8x64xf32, #tpu.memory_space<vmem>>, vector<1x8x64xf32>,
    %c3_i32 = arith.constant 3 : i32
    %93 = arith.index_cast %c3_i32 : i32 to index
    %c0_31 = arith.constant 0 : index
    %c0_32 = arith.constant 0 : index
    %94 = vector.load %arg6[%93, %c0_31, %c0_32] : memref<8x8x256xf32, #tpu.memory_space<vmem>>, vector<1x8x256xf32>
    %95 = vector.shape_cast %94 : vector<1x8x256xf32> to vector<8x256xf32>
    %cst_33 = arith.constant dense<0.000000e+00> : vector<8x256xf32>
    %96 = tpu.matmul %88, %9, %cst_33 {dimension_numbers = #tpu.dot_dimension_numbers<[1], [0], [0], [1], [0, 0, 1, 1], [], []>} : vector<8x64xf32>, vector<64x256xf32>, vector<8x256xf32> -> vector<8x256xf32>
    %97 = arith.addf %95, %96 : vector<8x256xf32>
    %98 = vector.broadcast %13 : vector<1x256xf32> to vector<8x256xf32>
    %99 = arith.mulf %97, %98 : vector<8x256xf32>
    %100 = math.tanh %99 : vector<8x256xf32>
    %101 = vector.broadcast %14 : vector<1x256xf32> to vector<8x256xf32>
    %102 = arith.mulf %100, %101 : vector<8x256xf32>
    %103 = vector.broadcast %15 : vector<1x256xf32> to vector<8x256xf32>
    %104 = arith.addf %102, %103 : vector<8x256xf32>
    %105 = vector.extract_strided_slice %104 {offsets = [0, 0], sizes = [8, 64], strides = [1, 1]} : vector<8x256xf32> to vector<8x64xf32>
    %106 = vector.extract_strided_slice %104 {offsets = [0, 64], sizes = [8, 64], strides = [1, 1]} : vector<8x256xf32> to vector<8x64xf32>
    %107 = vector.extract_strided_slice %104 {offsets = [0, 128], sizes = [8, 64], strides = [1, 1]} : vector<8x256xf32> to vector<8x64xf32>
    %108 = vector.extract_strided_slice %104 {offsets = [0, 192], sizes = [8, 64], strides = [1, 1]} : vector<8x256xf32> to vector<8x64xf32>
    %109 = arith.mulf %106, %86 : vector<8x64xf32>
    %110 = arith.mulf %105, %107 : vector<8x64xf32>
    %111 = arith.addf %109, %110 : vector<8x64xf32>
    %112 = math.tanh %111 : vector<8x64xf32>
    %113 = arith.mulf %108, %112 : vector<8x64xf32>
    %114 = arith.index_cast %c3_i32 : i32 to index
    %c0_34 = arith.constant 0 : index
    %c0_35 = arith.constant 0 : index
    %115 = vector.load %arg5[%114, %c0_34, %c0_35] : memref<8x8x64xf32, #tpu.memory_space<vmem>>, vector<1x8x64xf32>
    %116 = vector.shape_cast %115 : vector<1x8x64xf32> to vector<8x64xf32>
    %117 = vector.shape_cast %113 : vector<8x64xf32> to vector<1x8x64xf32>
    tpu.vector_store %arg5[%114, %c0_34, %c0_35], %117 {strides = array<i32>} : memref<8x8x64xf32, #tpu.memory_space<vmem>>, vector<1x8x64xf32>,
    %c4_i32 = arith.constant 4 : i32
    %118 = arith.index_cast %c4_i32 : i32 to index
    %c0_36 = arith.constant 0 : index
    %c0_37 = arith.constant 0 : index
    %119 = vector.load %arg6[%118, %c0_36, %c0_37] : memref<8x8x256xf32, #tpu.memory_space<vmem>>, vector<1x8x256xf32>
    %120 = vector.shape_cast %119 : vector<1x8x256xf32> to vector<8x256xf32>
    %cst_38 = arith.constant dense<0.000000e+00> : vector<8x256xf32>
    %121 = tpu.matmul %113, %9, %cst_38 {dimension_numbers = #tpu.dot_dimension_numbers<[1], [0], [0], [1], [0, 0, 1, 1], [], []>} : vector<8x64xf32>, vector<64x256xf32>, vector<8x256xf32> -> vector<8x256xf32>
    %122 = arith.addf %120, %121 : vector<8x256xf32>
    %123 = vector.broadcast %13 : vector<1x256xf32> to vector<8x256xf32>
    %124 = arith.mulf %122, %123 : vector<8x256xf32>
    %125 = math.tanh %124 : vector<8x256xf32>
    %126 = vector.broadcast %14 : vector<1x256xf32> to vector<8x256xf32>
    %127 = arith.mulf %125, %126 : vector<8x256xf32>
    %128 = vector.broadcast %15 : vector<1x256xf32> to vector<8x256xf32>
    %129 = arith.addf %127, %128 : vector<8x256xf32>
    %130 = vector.extract_strided_slice %129 {offsets = [0, 0], sizes = [8, 64], strides = [1, 1]} : vector<8x256xf32> to vector<8x64xf32>
    %131 = vector.extract_strided_slice %129 {offsets = [0, 64], sizes = [8, 64], strides = [1, 1]} : vector<8x256xf32> to vector<8x64xf32>
    %132 = vector.extract_strided_slice %129 {offsets = [0, 128], sizes = [8, 64], strides = [1, 1]} : vector<8x256xf32> to vector<8x64xf32>
    %133 = vector.extract_strided_slice %129 {offsets = [0, 192], sizes = [8, 64], strides = [1, 1]} : vector<8x256xf32> to vector<8x64xf32>
    %134 = arith.mulf %131, %111 : vector<8x64xf32>
    %135 = arith.mulf %130, %132 : vector<8x64xf32>
    %136 = arith.addf %134, %135 : vector<8x64xf32>
    %137 = math.tanh %136 : vector<8x64xf32>
    %138 = arith.mulf %133, %137 : vector<8x64xf32>
    %139 = arith.index_cast %c4_i32 : i32 to index
    %c0_39 = arith.constant 0 : index
    %c0_40 = arith.constant 0 : index
    %140 = vector.load %arg5[%139, %c0_39, %c0_40] : memref<8x8x64xf32, #tpu.memory_space<vmem>>, vector<1x8x64xf32>
    %141 = vector.shape_cast %140 : vector<1x8x64xf32> to vector<8x64xf32>
    %142 = vector.shape_cast %138 : vector<8x64xf32> to vector<1x8x64xf32>
    tpu.vector_store %arg5[%139, %c0_39, %c0_40], %142 {strides = array<i32>} : memref<8x8x64xf32, #tpu.memory_space<vmem>>, vector<1x8x64xf32>,
    %c5_i32 = arith.constant 5 : i32
    %143 = arith.index_cast %c5_i32 : i32 to index
    %c0_41 = arith.constant 0 : index
    %c0_42 = arith.constant 0 : index
    %144 = vector.load %arg6[%143, %c0_41, %c0_42] : memref<8x8x256xf32, #tpu.memory_space<vmem>>, vector<1x8x256xf32>
    %145 = vector.shape_cast %144 : vector<1x8x256xf32> to vector<8x256xf32>
    %cst_43 = arith.constant dense<0.000000e+00> : vector<8x256xf32>
    %146 = tpu.matmul %138, %9, %cst_43 {dimension_numbers = #tpu.dot_dimension_numbers<[1], [0], [0], [1], [0, 0, 1, 1], [], []>} : vector<8x64xf32>, vector<64x256xf32>, vector<8x256xf32> -> vector<8x256xf32>
    %147 = arith.addf %145, %146 : vector<8x256xf32>
    %148 = vector.broadcast %13 : vector<1x256xf32> to vector<8x256xf32>
    %149 = arith.mulf %147, %148 : vector<8x256xf32>
    %150 = math.tanh %149 : vector<8x256xf32>
    %151 = vector.broadcast %14 : vector<1x256xf32> to vector<8x256xf32>
    %152 = arith.mulf %150, %151 : vector<8x256xf32>
    %153 = vector.broadcast %15 : vector<1x256xf32> to vector<8x256xf32>
    %154 = arith.addf %152, %153 : vector<8x256xf32>
    %155 = vector.extract_strided_slice %154 {offsets = [0, 0], sizes = [8, 64], strides = [1, 1]} : vector<8x256xf32> to vector<8x64xf32>
    %156 = vector.extract_strided_slice %154 {offsets = [0, 64], sizes = [8, 64], strides = [1, 1]} : vector<8x256xf32> to vector<8x64xf32>
    %157 = vector.extract_strided_slice %154 {offsets = [0, 128], sizes = [8, 64], strides = [1, 1]} : vector<8x256xf32> to vector<8x64xf32>
    %158 = vector.extract_strided_slice %154 {offsets = [0, 192], sizes = [8, 64], strides = [1, 1]} : vector<8x256xf32> to vector<8x64xf32>
    %159 = arith.mulf %156, %136 : vector<8x64xf32>
    %160 = arith.mulf %155, %157 : vector<8x64xf32>
    %161 = arith.addf %159, %160 : vector<8x64xf32>
    %162 = math.tanh %161 : vector<8x64xf32>
    %163 = arith.mulf %158, %162 : vector<8x64xf32>
    %164 = arith.index_cast %c5_i32 : i32 to index
    %c0_44 = arith.constant 0 : index
    %c0_45 = arith.constant 0 : index
    %165 = vector.load %arg5[%164, %c0_44, %c0_45] : memref<8x8x64xf32, #tpu.memory_space<vmem>>, vector<1x8x64xf32>
    %166 = vector.shape_cast %165 : vector<1x8x64xf32> to vector<8x64xf32>
    %167 = vector.shape_cast %163 : vector<8x64xf32> to vector<1x8x64xf32>
    tpu.vector_store %arg5[%164, %c0_44, %c0_45], %167 {strides = array<i32>} : memref<8x8x64xf32, #tpu.memory_space<vmem>>, vector<1x8x64xf32>,
    %c6_i32 = arith.constant 6 : i32
    %168 = arith.index_cast %c6_i32 : i32 to index
    %c0_46 = arith.constant 0 : index
    %c0_47 = arith.constant 0 : index
    %169 = vector.load %arg6[%168, %c0_46, %c0_47] : memref<8x8x256xf32, #tpu.memory_space<vmem>>, vector<1x8x256xf32>
    %170 = vector.shape_cast %169 : vector<1x8x256xf32> to vector<8x256xf32>
    %cst_48 = arith.constant dense<0.000000e+00> : vector<8x256xf32>
    %171 = tpu.matmul %163, %9, %cst_48 {dimension_numbers = #tpu.dot_dimension_numbers<[1], [0], [0], [1], [0, 0, 1, 1], [], []>} : vector<8x64xf32>, vector<64x256xf32>, vector<8x256xf32> -> vector<8x256xf32>
    %172 = arith.addf %170, %171 : vector<8x256xf32>
    %173 = vector.broadcast %13 : vector<1x256xf32> to vector<8x256xf32>
    %174 = arith.mulf %172, %173 : vector<8x256xf32>
    %175 = math.tanh %174 : vector<8x256xf32>
    %176 = vector.broadcast %14 : vector<1x256xf32> to vector<8x256xf32>
    %177 = arith.mulf %175, %176 : vector<8x256xf32>
    %178 = vector.broadcast %15 : vector<1x256xf32> to vector<8x256xf32>
    %179 = arith.addf %177, %178 : vector<8x256xf32>
    %180 = vector.extract_strided_slice %179 {offsets = [0, 0], sizes = [8, 64], strides = [1, 1]} : vector<8x256xf32> to vector<8x64xf32>
    %181 = vector.extract_strided_slice %179 {offsets = [0, 64], sizes = [8, 64], strides = [1, 1]} : vector<8x256xf32> to vector<8x64xf32>
    %182 = vector.extract_strided_slice %179 {offsets = [0, 128], sizes = [8, 64], strides = [1, 1]} : vector<8x256xf32> to vector<8x64xf32>
    %183 = vector.extract_strided_slice %179 {offsets = [0, 192], sizes = [8, 64], strides = [1, 1]} : vector<8x256xf32> to vector<8x64xf32>
    %184 = arith.mulf %181, %161 : vector<8x64xf32>
    %185 = arith.mulf %180, %182 : vector<8x64xf32>
    %186 = arith.addf %184, %185 : vector<8x64xf32>
    %187 = math.tanh %186 : vector<8x64xf32>
    %188 = arith.mulf %183, %187 : vector<8x64xf32>
    %189 = arith.index_cast %c6_i32 : i32 to index
    %c0_49 = arith.constant 0 : index
    %c0_50 = arith.constant 0 : index
    %190 = vector.load %arg5[%189, %c0_49, %c0_50] : memref<8x8x64xf32, #tpu.memory_space<vmem>>, vector<1x8x64xf32>
    %191 = vector.shape_cast %190 : vector<1x8x64xf32> to vector<8x64xf32>
    %192 = vector.shape_cast %188 : vector<8x64xf32> to vector<1x8x64xf32>
    tpu.vector_store %arg5[%189, %c0_49, %c0_50], %192 {strides = array<i32>} : memref<8x8x64xf32, #tpu.memory_space<vmem>>, vector<1x8x64xf32>,
    %c7_i32 = arith.constant 7 : i32
    %193 = arith.index_cast %c7_i32 : i32 to index
    %c0_51 = arith.constant 0 : index
    %c0_52 = arith.constant 0 : index
    %194 = vector.load %arg6[%193, %c0_51, %c0_52] : memref<8x8x256xf32, #tpu.memory_space<vmem>>, vector<1x8x256xf32>
    %195 = vector.shape_cast %194 : vector<1x8x256xf32> to vector<8x256xf32>
    %cst_53 = arith.constant dense<0.000000e+00> : vector<8x256xf32>
    %196 = tpu.matmul %188, %9, %cst_53 {dimension_numbers = #tpu.dot_dimension_numbers<[1], [0], [0], [1], [0, 0, 1, 1], [], []>} : vector<8x64xf32>, vector<64x256xf32>, vector<8x256xf32> -> vector<8x256xf32>
    %197 = arith.addf %195, %196 : vector<8x256xf32>
    %198 = vector.broadcast %13 : vector<1x256xf32> to vector<8x256xf32>
    %199 = arith.mulf %197, %198 : vector<8x256xf32>
    %200 = math.tanh %199 : vector<8x256xf32>
    %201 = vector.broadcast %14 : vector<1x256xf32> to vector<8x256xf32>
    %202 = arith.mulf %200, %201 : vector<8x256xf32>
    %203 = vector.broadcast %15 : vector<1x256xf32> to vector<8x256xf32>
    %204 = arith.addf %202, %203 : vector<8x256xf32>
    %205 = vector.extract_strided_slice %204 {offsets = [0, 0], sizes = [8, 64], strides = [1, 1]} : vector<8x256xf32> to vector<8x64xf32>
    %206 = vector.extract_strided_slice %204 {offsets = [0, 64], sizes = [8, 64], strides = [1, 1]} : vector<8x256xf32> to vector<8x64xf32>
    %207 = vector.extract_strided_slice %204 {offsets = [0, 128], sizes = [8, 64], strides = [1, 1]} : vector<8x256xf32> to vector<8x64xf32>
    %208 = vector.extract_strided_slice %204 {offsets = [0, 192], sizes = [8, 64], strides = [1, 1]} : vector<8x256xf32> to vector<8x64xf32>
    %209 = arith.mulf %206, %186 : vector<8x64xf32>
    %210 = arith.mulf %205, %207 : vector<8x64xf32>
    %211 = arith.addf %209, %210 : vector<8x64xf32>
    %212 = math.tanh %211 : vector<8x64xf32>
    %213 = arith.mulf %208, %212 : vector<8x64xf32>
    %214 = arith.index_cast %c7_i32 : i32 to index
    %c0_54 = arith.constant 0 : index
    %c0_55 = arith.constant 0 : index
    %215 = vector.load %arg5[%214, %c0_54, %c0_55] : memref<8x8x64xf32, #tpu.memory_space<vmem>>, vector<1x8x64xf32>
    %216 = vector.shape_cast %215 : vector<1x8x64xf32> to vector<8x64xf32>
    %217 = vector.shape_cast %213 : vector<8x64xf32> to vector<1x8x64xf32>
    tpu.vector_store %arg5[%214, %c0_54, %c0_55], %217 {strides = array<i32>} : memref<8x8x64xf32, #tpu.memory_space<vmem>>, vector<1x8x64xf32>,
    %c8_i32 = arith.constant 8 : i32
    return
  }
  func.func @transform_0(%arg0: i32) -> (i32, i32, i32) {
    %c0_i32 = arith.constant 0 : i32
    %c0_i32_0 = arith.constant 0 : i32
    %c0_i32_1 = arith.constant 0 : i32
    return %c0_i32, %arg0, %c0_i32_0 : i32, i32, i32
  }
  func.func @transform_1(%arg0: i32) -> (i32, i32) {
    %c0_i32 = arith.constant 0 : i32
    %c0_i32_0 = arith.constant 0 : i32
    %c0_i32_1 = arith.constant 0 : i32
    return %c0_i32, %c0_i32_0 : i32, i32
  }
  func.func @transform_2(%arg0: i32) -> (i32, i32) {
    %c0_i32 = arith.constant 0 : i32
    %c0_i32_0 = arith.constant 0 : i32
    %c0_i32_1 = arith.constant 0 : i32
    return %c0_i32, %c0_i32_0 : i32, i32
  }
  func.func @transform_3(%arg0: i32) -> (i32, i32) {
    %c0_i32 = arith.constant 0 : i32
    %c0_i32_0 = arith.constant 0 : i32
    %c0_i32_1 = arith.constant 0 : i32
    return %c0_i32, %c0_i32_0 : i32, i32
  }
  func.func @transform_4(%arg0: i32) -> (i32, i32, i32) {
    %c0_i32 = arith.constant 0 : i32
    %c0_i32_0 = arith.constant 0 : i32
    %c0_i32_1 = arith.constant 0 : i32
    return %c0_i32, %arg0, %c0_i32_0 : i32, i32, i32
  }
}

</mosaic_0001>

<llo_original>
// kernel: discourse_encoder_forward.3
$region0: #{discourse_encoder_forward.3}
  #allocation0 [shape = 'u32[]', space=smem, size = 0x4, offset = 0x4, fixed_abs, tag = 'smem constant byte address 0x4 - core index']
  #allocation1 [shape = 'u32[72,128]{1,0:T(1,128)}', space=vmem, size = 0x9000, scoped, tag = 'internal scratch']
  #allocation2 [shape = 'f32[8,8,256]{2,1,0:T(8,128)}', space=vmem, size = 0x10000, scoped, tag = 'scratch operand']
  %s0 = inlined_call_operand.vmem [shape: f32[8,8,64], index: 0, kind: input, shape index: {}]
  %s1 = inlined_call_operand.vmem [shape: f32[64,256], index: 1, kind: input, shape index: {}]
  %s2 = inlined_call_operand.vmem [shape: f32[64,256], index: 2, kind: input, shape index: {}]
  %s3 = inlined_call_operand.vmem [shape: f32[1,256], index: 3, kind: input, shape index: {}]
  %s4 = inlined_call_operand.vmem [shape: f32[8,64], index: 4, kind: output, shape index: {}]
  %s5 = sld [smem:[#allocation0]]
  $region26: #{discourse_encoder_forward.3} parent=0
    _
  %s7 = ssub.s32 1, %s5
  %s8 = scalar_select 0, %s7, %s5
  // Predicated region
  $region2: #{discourse_encoder_forward.3} parent=0 // pred_check
    _
  $region3: #{discourse_encoder_forward.3} parent=0 // pred_check_branch
    %10 = sbr.rel (0) target = $region5
  $region4: #{discourse_encoder_forward.3} parent=0 // pred_region
    _
  $region5: #{discourse_encoder_forward.3} parent=0 // pred_fallthru
    _
  // Predicated region
  $region6: #{discourse_encoder_forward.3} parent=0 // pred_check
    _
  $region7: #{discourse_encoder_forward.3} parent=0 // pred_check_branch
    %12 = sbr.rel (0) target = $region9
  $region8: #{discourse_encoder_forward.3} parent=0 // pred_region
    _
  $region9: #{discourse_encoder_forward.3} parent=0 // pred_fallthru
    _
  // Predicated region
  $region10: #{discourse_encoder_forward.3} parent=0 // pred_check
    _
  $region11: #{discourse_encoder_forward.3} parent=0 // pred_check_branch
    %14 = sbr.rel (0) target = $region13
  $region12: #{discourse_encoder_forward.3} parent=0 // pred_region
    _
  $region13: #{discourse_encoder_forward.3} parent=0 // pred_fallthru
    _
  // Predicated region
  $region14: #{discourse_encoder_forward.3} parent=0 // pred_check
    _
  $region15: #{discourse_encoder_forward.3} parent=0 // pred_check_branch
    %16 = sbr.rel (0) target = $region17
  $region16: #{discourse_encoder_forward.3} parent=0 // pred_region
    _
  $region17: #{discourse_encoder_forward.3} parent=0 // pred_fallthru
    _
  %v17 = vld [vmem:[%s0] sm:$0xff]
  %v18 = vld [vmem:[%s0 + $0x8] sm:$0xff]
  %v19 = vld [vmem:[%s0 + $0x10] sm:$0xff]
  %v20 = vld [vmem:[%s0 + $0x18] sm:$0xff]
  %v21 = vld [vmem:[%s0 + $0x20] sm:$0xff]
  %v22 = vld [vmem:[%s0 + $0x28] sm:$0xff]
  %v23 = vld [vmem:[%s0 + $0x30] sm:$0xff]
  %v24 = vld [vmem:[%s0 + $0x38] sm:$0xff]
  %v25 = vld [vmem:[%s1] sm:$0xff]
  %v26 = vld [vmem:[%s1 + $0x8] sm:$0xff]
  %v27 = vld [vmem:[%s1 + $0x10] sm:$0xff]
  %v28 = vld [vmem:[%s1 + $0x18] sm:$0xff]
  %v29 = vld [vmem:[%s1 + $0x20] sm:$0xff]
  %v30 = vld [vmem:[%s1 + $0x28] sm:$0xff]
  %v31 = vld [vmem:[%s1 + $0x30] sm:$0xff]
  %v32 = vld [vmem:[%s1 + $0x38] sm:$0xff]
  %v33 = vld [vmem:[%s1 + $0x40] sm:$0xff]
  %v34 = vld [vmem:[%s1 + $0x48] sm:$0xff]
  %v35 = vld [vmem:[%s1 + $0x50] sm:$0xff]
  %v36 = vld [vmem:[%s1 + $0x58] sm:$0xff]
  %v37 = vld [vmem:[%s1 + $0x60] sm:$0xff]
  %v38 = vld [vmem:[%s1 + $0x68] sm:$0xff]
  %v39 = vld [vmem:[%s1 + $0x70] sm:$0xff]
  %v40 = vld [vmem:[%s1 + $0x78] sm:$0xff]
  %v41 = vld [vmem:[%s3] sm:$0x3]
  %v43 = vperm.slane %v41, 0
  %v44 = vperm.slane %v41, 1
  %vm47 = vcmask 523264
  %v49 = vsel %vm47, %v17, 0
  %v52 = vsel %vm47, %v18, 0
  %v55 = vsel %vm47, %v19, 0
  %v58 = vsel %vm47, %v20, 0
  %v61 = vsel %vm47, %v21, 0
  %v64 = vsel %vm47, %v22, 0
  %v67 = vsel %vm47, %v23, 0
  %v70 = vsel %vm47, %v24, 0
  %72 = vmatpush.msra.mxu0 0.0
  %73 = vmatpush.msra.mxu0 0.0
  %74 = vmatpush.msra.mxu0 0.0
  %75 = vmatpush.msra.mxu0 0.0
  %76 = vmatpush.msra.mxu0 0.0
  %77 = vmatpush.msra.mxu0 0.0
  %78 = vmatpush.msra.mxu0 0.0
  %79 = vmatpush.msra.mxu0 0.0
  %80 = vmatpush.msra.mxu0 %v39
  %81 = vmatpush.msra.mxu0 %v37
  %82 = vmatpush.msra.mxu0 %v35
  %83 = vmatpush.msra.mxu0 %v33
  %84 = vmatpush.msra.mxu0 %v31
  %85 = vmatpush.msra.mxu0 %v29
  %86 = vmatpush.msra.mxu0 %v27
  %87 = vmatpush.msra.mxu0 %v25
  %88 = vmatmul.f32.gmra.mxu0 %v49
  %v89 = vpop.f32.mrf.mxu0
  %v90 = vadd.f32 %v43, %v89
  %91 = vmatmul.f32.gmra.mxu0 %v52
  %v92 = vpop.f32.mrf.mxu0
  %v93 = vadd.f32 %v43, %v92
  %94 = vmatmul.f32.gmra.mxu0 %v55
  %v95 = vpop.f32.mrf.mxu0
  %v96 = vadd.f32 %v43, %v95
  %97 = vmatmul.f32.gmra.mxu0 %v58
  %v98 = vpop.f32.mrf.mxu0
  %v99 = vadd.f32 %v43, %v98
  %100 = vmatmul.f32.gmra.mxu0 %v61
  %v101 = vpop.f32.mrf.mxu0
  %v102 = vadd.f32 %v43, %v101
  %103 = vmatmul.f32.gmra.mxu0 %v64
  %v104 = vpop.f32.mrf.mxu0
  %v105 = vadd.f32 %v43, %v104
  %106 = vmatmul.f32.gmra.mxu0 %v67
  %v107 = vpop.f32.mrf.mxu0
  %v108 = vadd.f32 %v43, %v107
  %109 = vmatmul.f32.gmra.mxu0 %v70
  %v110 = vpop.f32.mrf.mxu0
  %v111 = vadd.f32 %v43, %v110
  %112 = vdwg.mxu0
  %113 = vmatpush.msra.mxu0 0.0
  %114 = vmatpush.msra.mxu0 0.0
  %115 = vmatpush.msra.mxu0 0.0
  %116 = vmatpush.msra.mxu0 0.0
  %117 = vmatpush.msra.mxu0 0.0
  %118 = vmatpush.msra.mxu0 0.0
  %119 = vmatpush.msra.mxu0 0.0
  %120 = vmatpush.msra.mxu0 0.0
  %121 = vmatpush.msra.mxu0 %v40
  %122 = vmatpush.msra.mxu0 %v38
  %123 = vmatpush.msra.mxu0 %v36
  %124 = vmatpush.msra.mxu0 %v34
  %125 = vmatpush.msra.mxu0 %v32
  %126 = vmatpush.msra.mxu0 %v30
  %127 = vmatpush.msra.mxu0 %v28
  %128 = vmatpush.msra.mxu0 %v26
  %129 = vmatmul.f32.gmra.mxu0 %v49
  %v130 = vpop.f32.mrf.mxu0
  %v131 = vadd.f32 %v44, %v130
  %132 = vmatmul.f32.gmra.mxu0 %v52
  %v133 = vpop.f32.mrf.mxu0
  %v134 = vadd.f32 %v44, %v133
  %135 = vmatmul.f32.gmra.mxu0 %v55
  %v136 = vpop.f32.mrf.mxu0
  %v137 = vadd.f32 %v44, %v136
  %138 = vmatmul.f32.gmra.mxu0 %v58
  %v139 = vpop.f32.mrf.mxu0
  %v140 = vadd.f32 %v44, %v139
  %141 = vmatmul.f32.gmra.mxu0 %v61
  %v142 = vpop.f32.mrf.mxu0
  %v143 = vadd.f32 %v44, %v142
  %144 = vmatmul.f32.gmra.mxu0 %v64
  %v145 = vpop.f32.mrf.mxu0
  %v146 = vadd.f32 %v44, %v145
  %147 = vmatmul.f32.gmra.mxu0 %v67
  %v148 = vpop.f32.mrf.mxu0
  %v149 = vadd.f32 %v44, %v148
  %150 = vmatmul.f32.gmra.mxu0 %v70
  %v151 = vpop.f32.mrf.mxu0
  %v152 = vadd.f32 %v44, %v151
  %153 = vdwg.mxu0
  %154 = vst [vmem:[#allocation2] sm:$0xff] %v90
  %155 = vst [vmem:[#allocation2 + $0x8] sm:$0xff] %v131
  %156 = vst [vmem:[#allocation2 + $0x10] sm:$0xff] %v93
  %157 = vst [vmem:[#allocation2 + $0x18] sm:$0xff] %v134
  %158 = vst [vmem:[#allocation2 + $0x20] sm:$0xff] %v96
  %159 = vst [vmem:[#allocation2 + $0x28] sm:$0xff] %v137
  %160 = vst [vmem:[#allocation2 + $0x30] sm:$0xff] %v99
  %161 = vst [vmem:[#allocation2 + $0x38] sm:$0xff] %v140
  %162 = vst [vmem:[#allocation2 + $0x40] sm:$0xff] %v102
  %163 = vst [vmem:[#allocation2 + $0x48] sm:$0xff] %v143
  %164 = vst [vmem:[#allocation2 + $0x50] sm:$0xff] %v105
  %165 = vst [vmem:[#allocation2 + $0x58] sm:$0xff] %v146
  %166 = vst [vmem:[#allocation2 + $0x60] sm:$0xff] %v108
  %167 = vst [vmem:[#allocation2 + $0x68] sm:$0xff] %v149
  %168 = vst [vmem:[#allocation2 + $0x70] sm:$0xff] %v111
  %169 = vst [vmem:[#allocation2 + $0x78] sm:$0xff] %v152
  %v170 = vld [vmem:[%s2] sm:$0xff]
  %v171 = vld [vmem:[%s2 + $0x8] sm:$0xff]
  %v172 = vld [vmem:[%s2 + $0x10] sm:$0xff]
  %v173 = vld [vmem:[%s2 + $0x18] sm:$0xff]
  %v174 = vld [vmem:[%s2 + $0x20] sm:$0xff]
  %v175 = vld [vmem:[%s2 + $0x28] sm:$0xff]
  %v176 = vld [vmem:[%s2 + $0x30] sm:$0xff]
  %v177 = vld [vmem:[%s2 + $0x38] sm:$0xff]
  %v178 = vld [vmem:[%s2 + $0x40] sm:$0xff]
  %v179 = vld [vmem:[%s2 + $0x48] sm:$0xff]
  %v180 = vld [vmem:[%s2 + $0x50] sm:$0xff]
  %v181 = vld [vmem:[%s2 + $0x58] sm:$0xff]
  %v182 = vld [vmem:[%s2 + $0x60] sm:$0xff]
  %v183 = vld [vmem:[%s2 + $0x68] sm:$0xff]
  %v184 = vld [vmem:[%s2 + $0x70] sm:$0xff]
  %v185 = vld [vmem:[%s2 + $0x78] sm:$0xff]
  %v186 = vsel %vm47, 1.0, 0.5
  %v187 = vsel %vm47, 0.0, 0.5
  %v188 = vld [vmem:[#allocation2] sm:$0xff]
  %v189 = vld [vmem:[#allocation2 + $0x8] sm:$0xff]
  %v191 = vsel %vm47, 0.0, 0
  %193 = vmatpush.msra.mxu0 0.0
  %194 = vmatpush.msra.mxu0 0.0
  %195 = vmatpush.msra.mxu0 0.0
  %196 = vmatpush.msra.mxu0 0.0
  %197 = vmatpush.msra.mxu0 0.0
  %198 = vmatpush.msra.mxu0 0.0
  %199 = vmatpush.msra.mxu0 0.0
  %200 = vmatpush.msra.mxu0 0.0
  %201 = vmatpush.msra.mxu0 %v184
  %202 = vmatpush.msra.mxu0 %v182
  %203 = vmatpush.msra.mxu0 %v180
  %204 = vmatpush.msra.mxu0 %v178
  %205 = vmatpush.msra.mxu0 %v176
  %206 = vmatpush.msra.mxu0 %v174
  %207 = vmatpush.msra.mxu0 %v172
  %208 = vmatpush.msra.mxu0 %v170
  %209 = vmatmul.f32.gmra.mxu0 %v191
  %v210 = vpop.f32.mrf.mxu0
  %v211 = vadd.f32 0.0, %v210
  %212 = vdwg.mxu0
  %213 = vmatpush.msra.mxu0 0.0
  %214 = vmatpush.msra.mxu0 0.0
  %215 = vmatpush.msra.mxu0 0.0
  %216 = vmatpush.msra.mxu0 0.0
  %217 = vmatpush.msra.mxu0 0.0
  %218 = vmatpush.msra.mxu0 0.0
  %219 = vmatpush.msra.mxu0 0.0
  %220 = vmatpush.msra.mxu0 0.0
  %221 = vmatpush.msra.mxu0 %v185
  %222 = vmatpush.msra.mxu0 %v183
  %223 = vmatpush.msra.mxu0 %v181
  %224 = vmatpush.msra.mxu0 %v179
  %225 = vmatpush.msra.mxu0 %v177
  %226 = vmatpush.msra.mxu0 %v175
  %227 = vmatpush.msra.mxu0 %v173
  %228 = vmatpush.msra.mxu0 %v171
  %229 = vmatmul.f32.gmra.mxu0 %v191
  %v230 = vpop.f32.mrf.mxu0
  %v231 = vadd.f32 0.0, %v230
  %232 = vdwg.mxu0
  %v233 = vadd.f32 %v188, %v211
  %v234 = vadd.f32 %v189, %v231
  %v235 = vperm.slane 0.5, 0
  %v236 = vperm.slane %v186, 0
  %v237 = vmul.f32 %v233, %v235
  %v238 = vmul.f32 %v234, %v236
  %v239 = vtanh.pop %v237
  %v240 = vtanh.pop %v238
  %v241 = vmul.f32 %v239, %v235
  %v242 = vmul.f32 %v240, %v236
  %v243 = vperm.slane %v187, 0
  %v244 = vadd.f32 %v241, %v235
  %v245 = vadd.f32 %v242, %v243
  %v246 = vmul.f32 %v244, 0.0
  %v247 = vmul.f32 %v244, %v245
  %249 = vrot.lane.b32.xlu0 %v247, 64
  %v250 = vpop.permute.xlu0 %249
  %v252 = vadd.f32 %v246, %v250
  %v253 = vtanh.pop %v252
  %v254 = vmul.f32 %v245, %v253
  %s255 = scalar_lea.vmem [#allocation2], 16
  %v256 = vld [vmem:[%s255] sm:$0xff]
  %v257 = vld [vmem:[%s255 + $0x8] sm:$0xff]
  %259 = vrot.lane.b32.xlu0 %v254, 64
  %v260 = vpop.permute.xlu0 %259
  %v261 = vsel %vm47, %v260, 0
  %263 = vmatpush.msra.mxu0 0.0
  %264 = vmatpush.msra.mxu0 0.0
  %265 = vmatpush.msra.mxu0 0.0
  %266 = vmatpush.msra.mxu0 0.0
  %267 = vmatpush.msra.mxu0 0.0
  %268 = vmatpush.msra.mxu0 0.0
  %269 = vmatpush.msra.mxu0 0.0
  %270 = vmatpush.msra.mxu0 0.0
  %271 = vmatpush.msra.mxu0 %v184
  %272 = vmatpush.msra.mxu0 %v182
  %273 = vmatpush.msra.mxu0 %v180
  %274 = vmatpush.msra.mxu0 %v178
  %275 = vmatpush.msra.mxu0 %v176
  %276 = vmatpush.msra.mxu0 %v174
  %277 = vmatpush.msra.mxu0 %v172
  %278 = vmatpush.msra.mxu0 %v170
  %279 = vmatmul.f32.gmra.mxu0 %v261
  %v280 = vpop.f32.mrf.mxu0
  %v281 = vadd.f32 0.0, %v280
  %282 = vdwg.mxu0
  %283 = vmatpush.msra.mxu0 0.0
  %284 = vmatpush.msra.mxu0 0.0
  %285 = vmatpush.msra.mxu0 0.0
  %286 = vmatpush.msra.mxu0 0.0
  %287 = vmatpush.msra.mxu0 0.0
  %288 = vmatpush.msra.mxu0 0.0
  %289 = vmatpush.msra.mxu0 0.0
  %290 = vmatpush.msra.mxu0 0.0
  %291 = vmatpush.msra.mxu0 %v185
  %292 = vmatpush.msra.mxu0 %v183
  %293 = vmatpush.msra.mxu0 %v181
  %294 = vmatpush.msra.mxu0 %v179
  %295 = vmatpush.msra.mxu0 %v177
  %296 = vmatpush.msra.mxu0 %v175
  %297 = vmatpush.msra.mxu0 %v173
  %298 = vmatpush.msra.mxu0 %v171
  %299 = vmatmul.f32.gmra.mxu0 %v261
  %v300 = vpop.f32.mrf.mxu0
  %v301 = vadd.f32 0.0, %v300
  %302 = vdwg.mxu0
  %v303 = vadd.f32 %v256, %v281
  %v304 = vadd.f32 %v257, %v301
  %v305 = vmul.f32 %v303, %v235
  %v306 = vmul.f32 %v304, %v236
  %v307 = vtanh.pop %v305
  %v308 = vtanh.pop %v306
  %v309 = vmul.f32 %v307, %v235
  %v310 = vmul.f32 %v308, %v236
  %v311 = vadd.f32 %v309, %v235
  %v312 = vadd.f32 %v310, %v243
  %v313 = vmul.f32 %v311, %v252
  %v314 = vmul.f32 %v311, %v312
  %316 = vrot.lane.b32.xlu0 %v314, 64
  %v317 = vpop.permute.xlu0 %316
  %v319 = vadd.f32 %v313, %v317
  %v320 = vtanh.pop %v319
  %v321 = vmul.f32 %v312, %v320
  %s322 = scalar_lea.vmem [#allocation2], 32
  %v323 = vld [vmem:[%s322] sm:$0xff]
  %v324 = vld [vmem:[%s322 + $0x8] sm:$0xff]
  %326 = vrot.lane.b32.xlu0 %v321, 64
  %v327 = vpop.permute.xlu0 %326
  %v328 = vsel %vm47, %v327, 0
  %330 = vmatpush.msra.mxu0 0.0
  %331 = vmatpush.msra.mxu0 0.0
  %332 = vmatpush.msra.mxu0 0.0
  %333 = vmatpush.msra.mxu0 0.0
  %334 = vmatpush.msra.mxu0 0.0
  %335 = vmatpush.msra.mxu0 0.0
  %336 = vmatpush.msra.mxu0 0.0
  %337 = vmatpush.msra.mxu0 0.0
  %338 = vmatpush.msra.mxu0 %v184
  %339 = vmatpush.msra.mxu0 %v182
  %340 = vmatpush.msra.mxu0 %v180
  %341 = vmatpush.msra.mxu0 %v178
  %342 = vmatpush.msra.mxu0 %v176
  %343 = vmatpush.msra.mxu0 %v174
  %344 = vmatpush.msra.mxu0 %v172
  %345 = vmatpush.msra.mxu0 %v170
  %346 = vmatmul.f32.gmra.mxu0 %v328
  %v347 = vpop.f32.mrf.mxu0
  %v348 = vadd.f32 0.0, %v347
  %349 = vdwg.mxu0
  %350 = vmatpush.msra.mxu0 0.0
  %351 = vmatpush.msra.mxu0 0.0
  %352 = vmatpush.msra.mxu0 0.0
  %353 = vmatpush.msra.mxu0 0.0
  %354 = vmatpush.msra.mxu0 0.0
  %355 = vmatpush.msra.mxu0 0.0
  %356 = vmatpush.msra.mxu0 0.0
  %357 = vmatpush.msra.mxu0 0.0
  %358 = vmatpush.msra.mxu0 %v185
  %359 = vmatpush.msra.mxu0 %v183
  %360 = vmatpush.msra.mxu0 %v181
  %361 = vmatpush.msra.mxu0 %v179
  %362 = vmatpush.msra.mxu0 %v177
  %363 = vmatpush.msra.mxu0 %v175
  %364 = vmatpush.msra.mxu0 %v173
  %365 = vmatpush.msra.mxu0 %v171
  %366 = vmatmul.f32.gmra.mxu0 %v328
  %v367 = vpop.f32.mrf.mxu0
  %v368 = vadd.f32 0.0, %v367
  %369 = vdwg.mxu0
  %v370 = vadd.f32 %v323, %v348
  %v371 = vadd.f32 %v324, %v368
  %v372 = vmul.f32 %v370, %v235
  %v373 = vmul.f32 %v371, %v236
  %v374 = vtanh.pop %v372
  %v375 = vtanh.pop %v373
  %v376 = vmul.f32 %v374, %v235
  %v377 = vmul.f32 %v375, %v236
  %v378 = vadd.f32 %v376, %v235
  %v379 = vadd.f32 %v377, %v243
  %v380 = vmul.f32 %v378, %v319
  %v381 = vmul.f32 %v378, %v379
  %383 = vrot.lane.b32.xlu0 %v381, 64
  %v384 = vpop.permute.xlu0 %383
  %v386 = vadd.f32 %v380, %v384
  %v387 = vtanh.pop %v386
  %v388 = vmul.f32 %v379, %v387
  %s389 = scalar_lea.vmem [#allocation2], 48
  %v390 = vld [vmem:[%s389] sm:$0xff]
  %v391 = vld [vmem:[%s389 + $0x8] sm:$0xff]
  %393 = vrot.lane.b32.xlu0 %v388, 64
  %v394 = vpop.permute.xlu0 %393
  %v395 = vsel %vm47, %v394, 0
  %397 = vmatpush.msra.mxu0 0.0
  %398 = vmatpush.msra.mxu0 0.0
  %399 = vmatpush.msra.mxu0 0.0
  %400 = vmatpush.msra.mxu0 0.0
  %401 = vmatpush.msra.mxu0 0.0
  %402 = vmatpush.msra.mxu0 0.0
  %403 = vmatpush.msra.mxu0 0.0
  %404 = vmatpush.msra.mxu0 0.0
  %405 = vmatpush.msra.mxu0 %v184
  %406 = vmatpush.msra.mxu0 %v182
  %407 = vmatpush.msra.mxu0 %v180
  %408 = vmatpush.msra.mxu0 %v178
  %409 = vmatpush.msra.mxu0 %v176
  %410 = vmatpush.msra.mxu0 %v174
  %411 = vmatpush.msra.mxu0 %v172
  %412 = vmatpush.msra.mxu0 %v170
  %413 = vmatmul.f32.gmra.mxu0 %v395
  %v414 = vpop.f32.mrf.mxu0
  %v415 = vadd.f32 0.0, %v414
  %416 = vdwg.mxu0
  %417 = vmatpush.msra.mxu0 0.0
  %418 = vmatpush.msra.mxu0 0.0
  %419 = vmatpush.msra.mxu0 0.0
  %420 = vmatpush.msra.mxu0 0.0
  %421 = vmatpush.msra.mxu0 0.0
  %422 = vmatpush.msra.mxu0 0.0
  %423 = vmatpush.msra.mxu0 0.0
  %424 = vmatpush.msra.mxu0 0.0
  %425 = vmatpush.msra.mxu0 %v185
  %426 = vmatpush.msra.mxu0 %v183
  %427 = vmatpush.msra.mxu0 %v181
  %428 = vmatpush.msra.mxu0 %v179
  %429 = vmatpush.msra.mxu0 %v177
  %430 = vmatpush.msra.mxu0 %v175
  %431 = vmatpush.msra.mxu0 %v173
  %432 = vmatpush.msra.mxu0 %v171
  %433 = vmatmul.f32.gmra.mxu0 %v395
  %v434 = vpop.f32.mrf.mxu0
  %v435 = vadd.f32 0.0, %v434
  %436 = vdwg.mxu0
  %v437 = vadd.f32 %v390, %v415
  %v438 = vadd.f32 %v391, %v435
  %v439 = vmul.f32 %v437, %v235
  %v440 = vmul.f32 %v438, %v236
  %v441 = vtanh.pop %v439
  %v442 = vtanh.pop %v440
  %v443 = vmul.f32 %v441, %v235
  %v444 = vmul.f32 %v442, %v236
  %v445 = vadd.f32 %v443, %v235
  %v446 = vadd.f32 %v444, %v243
  %v447 = vmul.f32 %v445, %v386
  %v448 = vmul.f32 %v445, %v446
  %450 = vrot.lane.b32.xlu0 %v448, 64
  %v451 = vpop.permute.xlu0 %450
  %v453 = vadd.f32 %v447, %v451
  %v454 = vtanh.pop %v453
  %v455 = vmul.f32 %v446, %v454
  %s456 = scalar_lea.vmem [#allocation2], 64
  %v457 = vld [vmem:[%s456] sm:$0xff]
  %v458 = vld [vmem:[%s456 + $0x8] sm:$0xff]
  %460 = vrot.lane.b32.xlu0 %v455, 64
  %v461 = vpop.permute.xlu0 %460
  %v462 = vsel %vm47, %v461, 0
  %464 = vmatpush.msra.mxu0 0.0
  %465 = vmatpush.msra.mxu0 0.0
  %466 = vmatpush.msra.mxu0 0.0
  %467 = vmatpush.msra.mxu0 0.0
  %468 = vmatpush.msra.mxu0 0.0
  %469 = vmatpush.msra.mxu0 0.0
  %470 = vmatpush.msra.mxu0 0.0
  %471 = vmatpush.msra.mxu0 0.0
  %472 = vmatpush.msra.mxu0 %v184
  %473 = vmatpush.msra.mxu0 %v182
  %474 = vmatpush.msra.mxu0 %v180
  %475 = vmatpush.msra.mxu0 %v178
  %476 = vmatpush.msra.mxu0 %v176
  %477 = vmatpush.msra.mxu0 %v174
  %478 = vmatpush.msra.mxu0 %v172
  %479 = vmatpush.msra.mxu0 %v170
  %480 = vmatmul.f32.gmra.mxu0 %v462
  %v481 = vpop.f32.mrf.mxu0
  %v482 = vadd.f32 0.0, %v481
  %483 = vdwg.mxu0
  %484 = vmatpush.msra.mxu0 0.0
  %485 = vmatpush.msra.mxu0 0.0
  %486 = vmatpush.msra.mxu0 0.0
  %487 = vmatpush.msra.mxu0 0.0
  %488 = vmatpush.msra.mxu0 0.0
  %489 = vmatpush.msra.mxu0 0.0
  %490 = vmatpush.msra.mxu0 0.0
  %491 = vmatpush.msra.mxu0 0.0
  %492 = vmatpush.msra.mxu0 %v185
  %493 = vmatpush.msra.mxu0 %v183
  %494 = vmatpush.msra.mxu0 %v181
  %495 = vmatpush.msra.mxu0 %v179
  %496 = vmatpush.msra.mxu0 %v177
  %497 = vmatpush.msra.mxu0 %v175
  %498 = vmatpush.msra.mxu0 %v173
  %499 = vmatpush.msra.mxu0 %v171
  %500 = vmatmul.f32.gmra.mxu0 %v462
  %v501 = vpop.f32.mrf.mxu0
  %v502 = vadd.f32 0.0, %v501
  %503 = vdwg.mxu0
  %v504 = vadd.f32 %v457, %v482
  %v505 = vadd.f32 %v458, %v502
  %v506 = vmul.f32 %v504, %v235
  %v507 = vmul.f32 %v505, %v236
  %v508 = vtanh.pop %v506
  %v509 = vtanh.pop %v507
  %v510 = vmul.f32 %v508, %v235
  %v511 = vmul.f32 %v509, %v236
  %v512 = vadd.f32 %v510, %v235
  %v513 = vadd.f32 %v511, %v243
  %v514 = vmul.f32 %v512, %v453
  %v515 = vmul.f32 %v512, %v513
  %517 = vrot.lane.b32.xlu0 %v515, 64
  %v518 = vpop.permute.xlu0 %517
  %v520 = vadd.f32 %v514, %v518
  %v521 = vtanh.pop %v520
  %v522 = vmul.f32 %v513, %v521
  %s523 = scalar_lea.vmem [#allocation2], 80
  %v524 = vld [vmem:[%s523] sm:$0xff]
  %v525 = vld [vmem:[%s523 + $0x8] sm:$0xff]
  %527 = vrot.lane.b32.xlu0 %v522, 64
  %v528 = vpop.permute.xlu0 %527
  %v529 = vsel %vm47, %v528, 0
  %531 = vmatpush.msra.mxu0 0.0
  %532 = vmatpush.msra.mxu0 0.0
  %533 = vmatpush.msra.mxu0 0.0
  %534 = vmatpush.msra.mxu0 0.0
  %535 = vmatpush.msra.mxu0 0.0
  %536 = vmatpush.msra.mxu0 0.0
  %537 = vmatpush.msra.mxu0 0.0
  %538 = vmatpush.msra.mxu0 0.0
  %539 = vmatpush.msra.mxu0 %v184
  %540 = vmatpush.msra.mxu0 %v182
  %541 = vmatpush.msra.mxu0 %v180
  %542 = vmatpush.msra.mxu0 %v178
  %543 = vmatpush.msra.mxu0 %v176
  %544 = vmatpush.msra.mxu0 %v174
  %545 = vmatpush.msra.mxu0 %v172
  %546 = vmatpush.msra.mxu0 %v170
  %547 = vmatmul.f32.gmra.mxu0 %v529
  %v548 = vpop.f32.mrf.mxu0
  %v549 = vadd.f32 0.0, %v548
  %550 = vdwg.mxu0
  %551 = vmatpush.msra.mxu0 0.0
  %552 = vmatpush.msra.mxu0 0.0
  %553 = vmatpush.msra.mxu0 0.0
  %554 = vmatpush.msra.mxu0 0.0
  %555 = vmatpush.msra.mxu0 0.0
  %556 = vmatpush.msra.mxu0 0.0
  %557 = vmatpush.msra.mxu0 0.0
  %558 = vmatpush.msra.mxu0 0.0
  %559 = vmatpush.msra.mxu0 %v185
  %560 = vmatpush.msra.mxu0 %v183
  %561 = vmatpush.msra.mxu0 %v181
  %562 = vmatpush.msra.mxu0 %v179
  %563 = vmatpush.msra.mxu0 %v177
  %564 = vmatpush.msra.mxu0 %v175
  %565 = vmatpush.msra.mxu0 %v173
  %566 = vmatpush.msra.mxu0 %v171
  %567 = vmatmul.f32.gmra.mxu0 %v529
  %v568 = vpop.f32.mrf.mxu0
  %v569 = vadd.f32 0.0, %v568
  %570 = vdwg.mxu0
  %v571 = vadd.f32 %v524, %v549
  %v572 = vadd.f32 %v525, %v569
  %v573 = vmul.f32 %v571, %v235
  %v574 = vmul.f32 %v572, %v236
  %v575 = vtanh.pop %v573
  %v576 = vtanh.pop %v574
  %v577 = vmul.f32 %v575, %v235
  %v578 = vmul.f32 %v576, %v236
  %v579 = vadd.f32 %v577, %v235
  %v580 = vadd.f32 %v578, %v243
  %v581 = vmul.f32 %v579, %v520
  %v582 = vmul.f32 %v579, %v580
  %584 = vrot.lane.b32.xlu0 %v582, 64
  %v585 = vpop.permute.xlu0 %584
  %v587 = vadd.f32 %v581, %v585
  %v588 = vtanh.pop %v587
  %v589 = vmul.f32 %v580, %v588
  %s590 = scalar_lea.vmem [#allocation2], 96
  %v591 = vld [vmem:[%s590] sm:$0xff]
  %v592 = vld [vmem:[%s590 + $0x8] sm:$0xff]
  %594 = vrot.lane.b32.xlu0 %v589, 64
  %v595 = vpop.permute.xlu0 %594
  %v596 = vsel %vm47, %v595, 0
  %598 = vmatpush.msra.mxu0 0.0
  %599 = vmatpush.msra.mxu0 0.0
  %600 = vmatpush.msra.mxu0 0.0
  %601 = vmatpush.msra.mxu0 0.0
  %602 = vmatpush.msra.mxu0 0.0
  %603 = vmatpush.msra.mxu0 0.0
  %604 = vmatpush.msra.mxu0 0.0
  %605 = vmatpush.msra.mxu0 0.0
  %606 = vmatpush.msra.mxu0 %v184
  %607 = vmatpush.msra.mxu0 %v182
  %608 = vmatpush.msra.mxu0 %v180
  %609 = vmatpush.msra.mxu0 %v178
  %610 = vmatpush.msra.mxu0 %v176
  %611 = vmatpush.msra.mxu0 %v174
  %612 = vmatpush.msra.mxu0 %v172
  %613 = vmatpush.msra.mxu0 %v170
  %614 = vmatmul.f32.gmra.mxu0 %v596
  %v615 = vpop.f32.mrf.mxu0
  %v616 = vadd.f32 0.0, %v615
  %617 = vdwg.mxu0
  %618 = vmatpush.msra.mxu0 0.0
  %619 = vmatpush.msra.mxu0 0.0
  %620 = vmatpush.msra.mxu0 0.0
  %621 = vmatpush.msra.mxu0 0.0
  %622 = vmatpush.msra.mxu0 0.0
  %623 = vmatpush.msra.mxu0 0.0
  %624 = vmatpush.msra.mxu0 0.0
  %625 = vmatpush.msra.mxu0 0.0
  %626 = vmatpush.msra.mxu0 %v185
  %627 = vmatpush.msra.mxu0 %v183
  %628 = vmatpush.msra.mxu0 %v181
  %629 = vmatpush.msra.mxu0 %v179
  %630 = vmatpush.msra.mxu0 %v177
  %631 = vmatpush.msra.mxu0 %v175
  %632 = vmatpush.msra.mxu0 %v173
  %633 = vmatpush.msra.mxu0 %v171
  %634 = vmatmul.f32.gmra.mxu0 %v596
  %v635 = vpop.f32.mrf.mxu0
  %v636 = vadd.f32 0.0, %v635
  %637 = vdwg.mxu0
  %v638 = vadd.f32 %v591, %v616
  %v639 = vadd.f32 %v592, %v636
  %v640 = vmul.f32 %v638, %v235
  %v641 = vmul.f32 %v639, %v236
  %v642 = vtanh.pop %v640
  %v643 = vtanh.pop %v641
  %v644 = vmul.f32 %v642, %v235
  %v645 = vmul.f32 %v643, %v236
  %v646 = vadd.f32 %v644, %v235
  %v647 = vadd.f32 %v645, %v243
  %v648 = vmul.f32 %v646, %v587
  %v649 = vmul.f32 %v646, %v647
  %651 = vrot.lane.b32.xlu0 %v649, 64
  %v652 = vpop.permute.xlu0 %651
  %v654 = vadd.f32 %v648, %v652
  %v655 = vtanh.pop %v654
  %v656 = vmul.f32 %v647, %v655
  %s657 = scalar_lea.vmem [#allocation2], 112
  %v658 = vld [vmem:[%s657] sm:$0xff]
  %v659 = vld [vmem:[%s657 + $0x8] sm:$0xff]
  %661 = vrot.lane.b32.xlu0 %v656, 64
  %v662 = vpop.permute.xlu0 %661
  %v663 = vsel %vm47, %v662, 0
  %665 = vmatpush.msra.mxu0 0.0
  %666 = vmatpush.msra.mxu0 0.0
  %667 = vmatpush.msra.mxu0 0.0
  %668 = vmatpush.msra.mxu0 0.0
  %669 = vmatpush.msra.mxu0 0.0
  %670 = vmatpush.msra.mxu0 0.0
  %671 = vmatpush.msra.mxu0 0.0
  %672 = vmatpush.msra.mxu0 0.0
  %673 = vmatpush.msra.mxu0 %v184
  %674 = vmatpush.msra.mxu0 %v182
  %675 = vmatpush.msra.mxu0 %v180
  %676 = vmatpush.msra.mxu0 %v178
  %677 = vmatpush.msra.mxu0 %v176
  %678 = vmatpush.msra.mxu0 %v174
  %679 = vmatpush.msra.mxu0 %v172
  %680 = vmatpush.msra.mxu0 %v170
  %681 = vmatmul.f32.gmra.mxu0 %v663
  %v682 = vpop.f32.mrf.mxu0
  %v683 = vadd.f32 0.0, %v682
  %684 = vdwg.mxu0
  %685 = vmatpush.msra.mxu0 0.0
  %686 = vmatpush.msra.mxu0 0.0
  %687 = vmatpush.msra.mxu0 0.0
  %688 = vmatpush.msra.mxu0 0.0
  %689 = vmatpush.msra.mxu0 0.0
  %690 = vmatpush.msra.mxu0 0.0
  %691 = vmatpush.msra.mxu0 0.0
  %692 = vmatpush.msra.mxu0 0.0
  %693 = vmatpush.msra.mxu0 %v185
  %694 = vmatpush.msra.mxu0 %v183
  %695 = vmatpush.msra.mxu0 %v181
  %696 = vmatpush.msra.mxu0 %v179
  %697 = vmatpush.msra.mxu0 %v177
  %698 = vmatpush.msra.mxu0 %v175
  %699 = vmatpush.msra.mxu0 %v173
  %700 = vmatpush.msra.mxu0 %v171
  %701 = vmatmul.f32.gmra.mxu0 %v663
  %v702 = vpop.f32.mrf.mxu0
  %v703 = vadd.f32 0.0, %v702
  %704 = vdwg.mxu0
  %v705 = vadd.f32 %v658, %v683
  %v706 = vadd.f32 %v659, %v703
  %v707 = vmul.f32 %v705, %v235
  %v708 = vmul.f32 %v706, %v236
  %v709 = vtanh.pop %v707
  %v710 = vtanh.pop %v708
  %v711 = vmul.f32 %v709, %v235
  %v712 = vmul.f32 %v710, %v236
  %v713 = vadd.f32 %v711, %v235
  %v714 = vadd.f32 %v712, %v243
  %v715 = vmul.f32 %v713, %v654
  %v716 = vmul.f32 %v713, %v714
  %718 = vrot.lane.b32.xlu0 %v716, 64
  %v719 = vpop.permute.xlu0 %718
  %v721 = vadd.f32 %v715, %v719
  %v722 = vtanh.pop %v721
  %v723 = vmul.f32 %v714, %v722
  %725 = vrot.lane.b32.xlu0 %v723, 64
  %v726 = vpop.permute.xlu0 %725
  %728 = vst.msk [vmem:[%s4] sm:$0xff] %vm47, %v726
  // Predicated region
  $region18: #{discourse_encoder_forward.3} parent=0 // pred_check
    _
  $region19: #{discourse_encoder_forward.3} parent=0 // pred_check_branch
    %730 = sbr.rel (0) target = $region21
  $region20: #{discourse_encoder_forward.3} parent=0 // pred_region
    _
  $region21: #{discourse_encoder_forward.3} parent=0 // pred_fallthru
    _
  // Predicated region
  $region22: #{discourse_encoder_forward.3} parent=0 // pred_check
    _
  $region23: #{discourse_encoder_forward.3} parent=0 // pred_check_branch
    %732 = sbr.rel (0) target = $region25
  $region24: #{discourse_encoder_forward.3} parent=0 // pred_region
    _
  $region25: #{discourse_encoder_forward.3} parent=0 // pred_fallthru
    _

// kernel: discourse_encoder_forward.2
$region0: #{discourse_encoder_forward.2}
  #allocation0 [shape = 'u32[]', space=smem, size = 0x4, offset = 0x4, fixed_abs, tag = 'smem constant byte address 0x4 - core index']
  #allocation1 [shape = 'u32[72,128]{1,0:T(1,128)}', space=vmem, size = 0x9000, scoped, tag = 'internal scratch']
  #allocation2 [shape = 'f32[8,8,256]{2,1,0:T(8,128)}', space=vmem, size = 0x10000, scoped, tag = 'scratch operand']
  %s0 = inlined_call_operand.vmem [shape: f32[8,8,64], index: 0, kind: input, shape index: {}]
  %s1 = inlined_call_operand.vmem [shape: f32[64,256], index: 1, kind: input, shape index: {}]
  %s2 = inlined_call_operand.vmem [shape: f32[64,256], index: 2, kind: input, shape index: {}]
  %s3 = inlined_call_operand.vmem [shape: f32[1,256], index: 3, kind: input, shape index: {}]
  %s4 = inlined_call_operand.vmem [shape: f32[8,8,64], index: 4, kind: output, shape index: {}]
  %s5 = sld [smem:[#allocation0]]
  $region26: #{discourse_encoder_forward.2} parent=0
    _
  %s7 = ssub.s32 1, %s5
  %s8 = scalar_select 0, %s7, %s5
  // Predicated region
  $region2: #{discourse_encoder_forward.2} parent=0 // pred_check
    _
  $region3: #{discourse_encoder_forward.2} parent=0 // pred_check_branch
    %10 = sbr.rel (0) target = $region5
  $region4: #{discourse_encoder_forward.2} parent=0 // pred_region
    _
  $region5: #{discourse_encoder_forward.2} parent=0 // pred_fallthru
    _
  // Predicated region
  $region6: #{discourse_encoder_forward.2} parent=0 // pred_check
    _
  $region7: #{discourse_encoder_forward.2} parent=0 // pred_check_branch
    %12 = sbr.rel (0) target = $region9
  $region8: #{discourse_encoder_forward.2} parent=0 // pred_region
    _
  $region9: #{discourse_encoder_forward.2} parent=0 // pred_fallthru
    _
  // Predicated region
  $region10: #{discourse_encoder_forward.2} parent=0 // pred_check
    _
  $region11: #{discourse_encoder_forward.2} parent=0 // pred_check_branch
    %14 = sbr.rel (0) target = $region13
  $region12: #{discourse_encoder_forward.2} parent=0 // pred_region
    _
  $region13: #{discourse_encoder_forward.2} parent=0 // pred_fallthru
    _
  // Predicated region
  $region14: #{discourse_encoder_forward.2} parent=0 // pred_check
    _
  $region15: #{discourse_encoder_forward.2} parent=0 // pred_check_branch
    %16 = sbr.rel (0) target = $region17
  $region16: #{discourse_encoder_forward.2} parent=0 // pred_region
    _
  $region17: #{discourse_encoder_forward.2} parent=0 // pred_fallthru
    _
  %v17 = vld [vmem:[%s0] sm:$0xff]
  %v18 = vld [vmem:[%s0 + $0x8] sm:$0xff]
  %v19 = vld [vmem:[%s0 + $0x10] sm:$0xff]
  %v20 = vld [vmem:[%s0 + $0x18] sm:$0xff]
  %v21 = vld [vmem:[%s0 + $0x20] sm:$0xff]
  %v22 = vld [vmem:[%s0 + $0x28] sm:$0xff]
  %v23 = vld [vmem:[%s0 + $0x30] sm:$0xff]
  %v24 = vld [vmem:[%s0 + $0x38] sm:$0xff]
  %v25 = vld [vmem:[%s1] sm:$0xff]
  %v26 = vld [vmem:[%s1 + $0x8] sm:$0xff]
  %v27 = vld [vmem:[%s1 + $0x10] sm:$0xff]
  %v28 = vld [vmem:[%s1 + $0x18] sm:$0xff]
  %v29 = vld [vmem:[%s1 + $0x20] sm:$0xff]
  %v30 = vld [vmem:[%s1 + $0x28] sm:$0xff]
  %v31 = vld [vmem:[%s1 + $0x30] sm:$0xff]
  %v32 = vld [vmem:[%s1 + $0x38] sm:$0xff]
  %v33 = vld [vmem:[%s1 + $0x40] sm:$0xff]
  %v34 = vld [vmem:[%s1 + $0x48] sm:$0xff]
  %v35 = vld [vmem:[%s1 + $0x50] sm:$0xff]
  %v36 = vld [vmem:[%s1 + $0x58] sm:$0xff]
  %v37 = vld [vmem:[%s1 + $0x60] sm:$0xff]
  %v38 = vld [vmem:[%s1 + $0x68] sm:$0xff]
  %v39 = vld [vmem:[%s1 + $0x70] sm:$0xff]
  %v40 = vld [vmem:[%s1 + $0x78] sm:$0xff]
  %v41 = vld [vmem:[%s3] sm:$0x3]
  %v43 = vperm.slane %v41, 0
  %v44 = vperm.slane %v41, 1
  %vm47 = vcmask 523264
  %v49 = vsel %vm47, %v17, 0
  %v52 = vsel %vm47, %v18, 0
  %v55 = vsel %vm47, %v19, 0
  %v58 = vsel %vm47, %v20, 0
  %v61 = vsel %vm47, %v21, 0
  %v64 = vsel %vm47, %v22, 0
  %v67 = vsel %vm47, %v23, 0
  %v70 = vsel %vm47, %v24, 0
  %72 = vmatpush.msra.mxu0 0.0
  %73 = vmatpush.msra.mxu0 0.0
  %74 = vmatpush.msra.mxu0 0.0
  %75 = vmatpush.msra.mxu0 0.0
  %76 = vmatpush.msra.mxu0 0.0
  %77 = vmatpush.msra.mxu0 0.0
  %78 = vmatpush.msra.mxu0 0.0
  %79 = vmatpush.msra.mxu0 0.0
  %80 = vmatpush.msra.mxu0 %v39
  %81 = vmatpush.msra.mxu0 %v37
  %82 = vmatpush.msra.mxu0 %v35
  %83 = vmatpush.msra.mxu0 %v33
  %84 = vmatpush.msra.mxu0 %v31
  %85 = vmatpush.msra.mxu0 %v29
  %86 = vmatpush.msra.mxu0 %v27
  %87 = vmatpush.msra.mxu0 %v25
  %88 = vmatmul.f32.gmra.mxu0 %v49
  %v89 = vpop.f32.mrf.mxu0
  %v90 = vadd.f32 %v43, %v89
  %91 = vmatmul.f32.gmra.mxu0 %v52
  %v92 = vpop.f32.mrf.mxu0
  %v93 = vadd.f32 %v43, %v92
  %94 = vmatmul.f32.gmra.mxu0 %v55
  %v95 = vpop.f32.mrf.mxu0
  %v96 = vadd.f32 %v43, %v95
  %97 = vmatmul.f32.gmra.mxu0 %v58
  %v98 = vpop.f32.mrf.mxu0
  %v99 = vadd.f32 %v43, %v98
  %100 = vmatmul.f32.gmra.mxu0 %v61
  %v101 = vpop.f32.mrf.mxu0
  %v102 = vadd.f32 %v43, %v101
  %103 = vmatmul.f32.gmra.mxu0 %v64
  %v104 = vpop.f32.mrf.mxu0
  %v105 = vadd.f32 %v43, %v104
  %106 = vmatmul.f32.gmra.mxu0 %v67
  %v107 = vpop.f32.mrf.mxu0
  %v108 = vadd.f32 %v43, %v107
  %109 = vmatmul.f32.gmra.mxu0 %v70
  %v110 = vpop.f32.mrf.mxu0
  %v111 = vadd.f32 %v43, %v110
  %112 = vdwg.mxu0
  %113 = vmatpush.msra.mxu0 0.0
  %114 = vmatpush.msra.mxu0 0.0
  %115 = vmatpush.msra.mxu0 0.0
  %116 = vmatpush.msra.mxu0 0.0
  %117 = vmatpush.msra.mxu0 0.0
  %118 = vmatpush.msra.mxu0 0.0
  %119 = vmatpush.msra.mxu0 0.0
  %120 = vmatpush.msra.mxu0 0.0
  %121 = vmatpush.msra.mxu0 %v40
  %122 = vmatpush.msra.mxu0 %v38
  %123 = vmatpush.msra.mxu0 %v36
  %124 = vmatpush.msra.mxu0 %v34
  %125 = vmatpush.msra.mxu0 %v32
  %126 = vmatpush.msra.mxu0 %v30
  %127 = vmatpush.msra.mxu0 %v28
  %128 = vmatpush.msra.mxu0 %v26
  %129 = vmatmul.f32.gmra.mxu0 %v49
  %v130 = vpop.f32.mrf.mxu0
  %v131 = vadd.f32 %v44, %v130
  %132 = vmatmul.f32.gmra.mxu0 %v52
  %v133 = vpop.f32.mrf.mxu0
  %v134 = vadd.f32 %v44, %v133
  %135 = vmatmul.f32.gmra.mxu0 %v55
  %v136 = vpop.f32.mrf.mxu0
  %v137 = vadd.f32 %v44, %v136
  %138 = vmatmul.f32.gmra.mxu0 %v58
  %v139 = vpop.f32.mrf.mxu0
  %v140 = vadd.f32 %v44, %v139
  %141 = vmatmul.f32.gmra.mxu0 %v61
  %v142 = vpop.f32.mrf.mxu0
  %v143 = vadd.f32 %v44, %v142
  %144 = vmatmul.f32.gmra.mxu0 %v64
  %v145 = vpop.f32.mrf.mxu0
  %v146 = vadd.f32 %v44, %v145
  %147 = vmatmul.f32.gmra.mxu0 %v67
  %v148 = vpop.f32.mrf.mxu0
  %v149 = vadd.f32 %v44, %v148
  %150 = vmatmul.f32.gmra.mxu0 %v70
  %v151 = vpop.f32.mrf.mxu0
  %v152 = vadd.f32 %v44, %v151
  %153 = vdwg.mxu0
  %154 = vst [vmem:[#allocation2] sm:$0xff] %v90
  %155 = vst [vmem:[#allocation2 + $0x8] sm:$0xff] %v131
  %156 = vst [vmem:[#allocation2 + $0x10] sm:$0xff] %v93
  %157 = vst [vmem:[#allocation2 + $0x18] sm:$0xff] %v134
  %158 = vst [vmem:[#allocation2 + $0x20] sm:$0xff] %v96
  %159 = vst [vmem:[#allocation2 + $0x28] sm:$0xff] %v137
  %160 = vst [vmem:[#allocation2 + $0x30] sm:$0xff] %v99
  %161 = vst [vmem:[#allocation2 + $0x38] sm:$0xff] %v140
  %162 = vst [vmem:[#allocation2 + $0x40] sm:$0xff] %v102
  %163 = vst [vmem:[#allocation2 + $0x48] sm:$0xff] %v143
  %164 = vst [vmem:[#allocation2 + $0x50] sm:$0xff] %v105
  %165 = vst [vmem:[#allocation2 + $0x58] sm:$0xff] %v146
  %166 = vst [vmem:[#allocation2 + $0x60] sm:$0xff] %v108
  %167 = vst [vmem:[#allocation2 + $0x68] sm:$0xff] %v149
  %168 = vst [vmem:[#allocation2 + $0x70] sm:$0xff] %v111
  %169 = vst [vmem:[#allocation2 + $0x78] sm:$0xff] %v152
  %v170 = vld [vmem:[%s2] sm:$0xff]
  %v171 = vld [vmem:[%s2 + $0x8] sm:$0xff]
  %v172 = vld [vmem:[%s2 + $0x10] sm:$0xff]
  %v173 = vld [vmem:[%s2 + $0x18] sm:$0xff]
  %v174 = vld [vmem:[%s2 + $0x20] sm:$0xff]
  %v175 = vld [vmem:[%s2 + $0x28] sm:$0xff]
  %v176 = vld [vmem:[%s2 + $0x30] sm:$0xff]
  %v177 = vld [vmem:[%s2 + $0x38] sm:$0xff]
  %v178 = vld [vmem:[%s2 + $0x40] sm:$0xff]
  %v179 = vld [vmem:[%s2 + $0x48] sm:$0xff]
  %v180 = vld [vmem:[%s2 + $0x50] sm:$0xff]
  %v181 = vld [vmem:[%s2 + $0x58] sm:$0xff]
  %v182 = vld [vmem:[%s2 + $0x60] sm:$0xff]
  %v183 = vld [vmem:[%s2 + $0x68] sm:$0xff]
  %v184 = vld [vmem:[%s2 + $0x70] sm:$0xff]
  %v185 = vld [vmem:[%s2 + $0x78] sm:$0xff]
  %v186 = vsel %vm47, 1.0, 0.5
  %v187 = vsel %vm47, 0.0, 0.5
  %v188 = vld [vmem:[#allocation2] sm:$0xff]
  %v189 = vld [vmem:[#allocation2 + $0x8] sm:$0xff]
  %v191 = vsel %vm47, 0.0, 0
  %193 = vmatpush.msra.mxu0 0.0
  %194 = vmatpush.msra.mxu0 0.0
  %195 = vmatpush.msra.mxu0 0.0
  %196 = vmatpush.msra.mxu0 0.0
  %197 = vmatpush.msra.mxu0 0.0
  %198 = vmatpush.msra.mxu0 0.0
  %199 = vmatpush.msra.mxu0 0.0
  %200 = vmatpush.msra.mxu0 0.0
  %201 = vmatpush.msra.mxu0 %v184
  %202 = vmatpush.msra.mxu0 %v182
  %203 = vmatpush.msra.mxu0 %v180
  %204 = vmatpush.msra.mxu0 %v178
  %205 = vmatpush.msra.mxu0 %v176
  %206 = vmatpush.msra.mxu0 %v174
  %207 = vmatpush.msra.mxu0 %v172
  %208 = vmatpush.msra.mxu0 %v170
  %209 = vmatmul.f32.gmra.mxu0 %v191
  %v210 = vpop.f32.mrf.mxu0
  %v211 = vadd.f32 0.0, %v210
  %212 = vdwg.mxu0
  %213 = vmatpush.msra.mxu0 0.0
  %214 = vmatpush.msra.mxu0 0.0
  %215 = vmatpush.msra.mxu0 0.0
  %216 = vmatpush.msra.mxu0 0.0
  %217 = vmatpush.msra.mxu0 0.0
  %218 = vmatpush.msra.mxu0 0.0
  %219 = vmatpush.msra.mxu0 0.0
  %220 = vmatpush.msra.mxu0 0.0
  %221 = vmatpush.msra.mxu0 %v185
  %222 = vmatpush.msra.mxu0 %v183
  %223 = vmatpush.msra.mxu0 %v181
  %224 = vmatpush.msra.mxu0 %v179
  %225 = vmatpush.msra.mxu0 %v177
  %226 = vmatpush.msra.mxu0 %v175
  %227 = vmatpush.msra.mxu0 %v173
  %228 = vmatpush.msra.mxu0 %v171
  %229 = vmatmul.f32.gmra.mxu0 %v191
  %v230 = vpop.f32.mrf.mxu0
  %v231 = vadd.f32 0.0, %v230
  %232 = vdwg.mxu0
  %v233 = vadd.f32 %v188, %v211
  %v234 = vadd.f32 %v189, %v231
  %v235 = vperm.slane 0.5, 0
  %v236 = vperm.slane %v186, 0
  %v237 = vmul.f32 %v233, %v235
  %v238 = vmul.f32 %v234, %v236
  %v239 = vtanh.pop %v237
  %v240 = vtanh.pop %v238
  %v241 = vmul.f32 %v239, %v235
  %v242 = vmul.f32 %v240, %v236
  %v243 = vperm.slane %v187, 0
  %v244 = vadd.f32 %v241, %v235
  %v245 = vadd.f32 %v242, %v243
  %v246 = vmul.f32 %v244, 0.0
  %v247 = vmul.f32 %v244, %v245
  %249 = vrot.lane.b32.xlu0 %v247, 64
  %v250 = vpop.permute.xlu0 %249
  %v252 = vadd.f32 %v246, %v250
  %v253 = vtanh.pop %v252
  %v254 = vmul.f32 %v245, %v253
  %256 = vrot.lane.b32.xlu0 %v254, 64
  %v257 = vpop.permute.xlu0 %256
  %259 = vst.msk [vmem:[%s4] sm:$0xff] %vm47, %v257
  %s260 = scalar_lea.vmem [#allocation2], 16
  %v261 = vld [vmem:[%s260] sm:$0xff]
  %v262 = vld [vmem:[%s260 + $0x8] sm:$0xff]
  %v263 = vsel %vm47, %v257, 0
  %265 = vmatpush.msra.mxu0 0.0
  %266 = vmatpush.msra.mxu0 0.0
  %267 = vmatpush.msra.mxu0 0.0
  %268 = vmatpush.msra.mxu0 0.0
  %269 = vmatpush.msra.mxu0 0.0
  %270 = vmatpush.msra.mxu0 0.0
  %271 = vmatpush.msra.mxu0 0.0
  %272 = vmatpush.msra.mxu0 0.0
  %273 = vmatpush.msra.mxu0 %v184
  %274 = vmatpush.msra.mxu0 %v182
  %275 = vmatpush.msra.mxu0 %v180
  %276 = vmatpush.msra.mxu0 %v178
  %277 = vmatpush.msra.mxu0 %v176
  %278 = vmatpush.msra.mxu0 %v174
  %279 = vmatpush.msra.mxu0 %v172
  %280 = vmatpush.msra.mxu0 %v170
  %281 = vmatmul.f32.gmra.mxu0 %v263
  %v282 = vpop.f32.mrf.mxu0
  %v283 = vadd.f32 0.0, %v282
  %284 = vdwg.mxu0
  %285 = vmatpush.msra.mxu0 0.0
  %286 = vmatpush.msra.mxu0 0.0
  %287 = vmatpush.msra.mxu0 0.0
  %288 = vmatpush.msra.mxu0 0.0
  %289 = vmatpush.msra.mxu0 0.0
  %290 = vmatpush.msra.mxu0 0.0
  %291 = vmatpush.msra.mxu0 0.0
  %292 = vmatpush.msra.mxu0 0.0
  %293 = vmatpush.msra.mxu0 %v185
  %294 = vmatpush.msra.mxu0 %v183
  %295 = vmatpush.msra.mxu0 %v181
  %296 = vmatpush.msra.mxu0 %v179
  %297 = vmatpush.msra.mxu0 %v177
  %298 = vmatpush.msra.mxu0 %v175
  %299 = vmatpush.msra.mxu0 %v173
  %300 = vmatpush.msra.mxu0 %v171
  %301 = vmatmul.f32.gmra.mxu0 %v263
  %v302 = vpop.f32.mrf.mxu0
  %v303 = vadd.f32 0.0, %v302
  %304 = vdwg.mxu0
  %v305 = vadd.f32 %v261, %v283
  %v306 = vadd.f32 %v262, %v303
  %v307 = vmul.f32 %v305, %v235
  %v308 = vmul.f32 %v306, %v236
  %v309 = vtanh.pop %v307
  %v310 = vtanh.pop %v308
  %v311 = vmul.f32 %v309, %v235
  %v312 = vmul.f32 %v310, %v236
  %v313 = vadd.f32 %v311, %v235
  %v314 = vadd.f32 %v312, %v243
  %v315 = vmul.f32 %v313, %v252
  %v316 = vmul.f32 %v313, %v314
  %318 = vrot.lane.b32.xlu0 %v316, 64
  %v319 = vpop.permute.xlu0 %318
  %v321 = vadd.f32 %v315, %v319
  %v322 = vtanh.pop %v321
  %v323 = vmul.f32 %v314, %v322
  %325 = vrot.lane.b32.xlu0 %v323, 64
  %v326 = vpop.permute.xlu0 %325
  %s328 = scalar_lea.vmem %s4, 8
  %329 = vst.msk [vmem:[%s328] sm:$0xff] %vm47, %v326
  %s330 = scalar_lea.vmem [#allocation2], 32
  %v331 = vld [vmem:[%s330] sm:$0xff]
  %v332 = vld [vmem:[%s330 + $0x8] sm:$0xff]
  %v333 = vsel %vm47, %v326, 0
  %335 = vmatpush.msra.mxu0 0.0
  %336 = vmatpush.msra.mxu0 0.0
  %337 = vmatpush.msra.mxu0 0.0
  %338 = vmatpush.msra.mxu0 0.0
  %339 = vmatpush.msra.mxu0 0.0
  %340 = vmatpush.msra.mxu0 0.0
  %341 = vmatpush.msra.mxu0 0.0
  %342 = vmatpush.msra.mxu0 0.0
  %343 = vmatpush.msra.mxu0 %v184
  %344 = vmatpush.msra.mxu0 %v182
  %345 = vmatpush.msra.mxu0 %v180
  %346 = vmatpush.msra.mxu0 %v178
  %347 = vmatpush.msra.mxu0 %v176
  %348 = vmatpush.msra.mxu0 %v174
  %349 = vmatpush.msra.mxu0 %v172
  %350 = vmatpush.msra.mxu0 %v170
  %351 = vmatmul.f32.gmra.mxu0 %v333
  %v352 = vpop.f32.mrf.mxu0
  %v353 = vadd.f32 0.0, %v352
  %354 = vdwg.mxu0
  %355 = vmatpush.msra.mxu0 0.0
  %356 = vmatpush.msra.mxu0 0.0
  %357 = vmatpush.msra.mxu0 0.0
  %358 = vmatpush.msra.mxu0 0.0
  %359 = vmatpush.msra.mxu0 0.0
  %360 = vmatpush.msra.mxu0 0.0
  %361 = vmatpush.msra.mxu0 0.0
  %362 = vmatpush.msra.mxu0 0.0
  %363 = vmatpush.msra.mxu0 %v185
  %364 = vmatpush.msra.mxu0 %v183
  %365 = vmatpush.msra.mxu0 %v181
  %366 = vmatpush.msra.mxu0 %v179
  %367 = vmatpush.msra.mxu0 %v177
  %368 = vmatpush.msra.mxu0 %v175
  %369 = vmatpush.msra.mxu0 %v173
  %370 = vmatpush.msra.mxu0 %v171
  %371 = vmatmul.f32.gmra.mxu0 %v333
  %v372 = vpop.f32.mrf.mxu0
  %v373 = vadd.f32 0.0, %v372
  %374 = vdwg.mxu0
  %v375 = vadd.f32 %v331, %v353
  %v376 = vadd.f32 %v332, %v373
  %v377 = vmul.f32 %v375, %v235
  %v378 = vmul.f32 %v376, %v236
  %v379 = vtanh.pop %v377
  %v380 = vtanh.pop %v378
  %v381 = vmul.f32 %v379, %v235
  %v382 = vmul.f32 %v380, %v236
  %v383 = vadd.f32 %v381, %v235
  %v384 = vadd.f32 %v382, %v243
  %v385 = vmul.f32 %v383, %v321
  %v386 = vmul.f32 %v383, %v384
  %388 = vrot.lane.b32.xlu0 %v386, 64
  %v389 = vpop.permute.xlu0 %388
  %v391 = vadd.f32 %v385, %v389
  %v392 = vtanh.pop %v391
  %v393 = vmul.f32 %v384, %v392
  %395 = vrot.lane.b32.xlu0 %v393, 64
  %v396 = vpop.permute.xlu0 %395
  %s398 = scalar_lea.vmem %s4, 16
  %399 = vst.msk [vmem:[%s398] sm:$0xff] %vm47, %v396
  %s400 = scalar_lea.vmem [#allocation2], 48
  %v401 = vld [vmem:[%s400] sm:$0xff]
  %v402 = vld [vmem:[%s400 + $0x8] sm:$0xff]
  %v403 = vsel %vm47, %v396, 0
  %405 = vmatpush.msra.mxu0 0.0
  %406 = vmatpush.msra.mxu0 0.0
  %407 = vmatpush.msra.mxu0 0.0
  %408 = vmatpush.msra.mxu0 0.0
  %409 = vmatpush.msra.mxu0 0.0
  %410 = vmatpush.msra.mxu0 0.0
  %411 = vmatpush.msra.mxu0 0.0
  %412 = vmatpush.msra.mxu0 0.0
  %413 = vmatpush.msra.mxu0 %v184
  %414 = vmatpush.msra.mxu0 %v182
  %415 = vmatpush.msra.mxu0 %v180
  %416 = vmatpush.msra.mxu0 %v178
  %417 = vmatpush.msra.mxu0 %v176
  %418 = vmatpush.msra.mxu0 %v174
  %419 = vmatpush.msra.mxu0 %v172
  %420 = vmatpush.msra.mxu0 %v170
  %421 = vmatmul.f32.gmra.mxu0 %v403
  %v422 = vpop.f32.mrf.mxu0
  %v423 = vadd.f32 0.0, %v422
  %424 = vdwg.mxu0
  %425 = vmatpush.msra.mxu0 0.0
  %426 = vmatpush.msra.mxu0 0.0
  %427 = vmatpush.msra.mxu0 0.0
  %428 = vmatpush.msra.mxu0 0.0
  %429 = vmatpush.msra.mxu0 0.0
  %430 = vmatpush.msra.mxu0 0.0
  %431 = vmatpush.msra.mxu0 0.0
  %432 = vmatpush.msra.mxu0 0.0
  %433 = vmatpush.msra.mxu0 %v185
  %434 = vmatpush.msra.mxu0 %v183
  %435 = vmatpush.msra.mxu0 %v181
  %436 = vmatpush.msra.mxu0 %v179
  %437 = vmatpush.msra.mxu0 %v177
  %438 = vmatpush.msra.mxu0 %v175
  %439 = vmatpush.msra.mxu0 %v173
  %440 = vmatpush.msra.mxu0 %v171
  %441 = vmatmul.f32.gmra.mxu0 %v403
  %v442 = vpop.f32.mrf.mxu0
  %v443 = vadd.f32 0.0, %v442
  %444 = vdwg.mxu0
  %v445 = vadd.f32 %v401, %v423
  %v446 = vadd.f32 %v402, %v443
  %v447 = vmul.f32 %v445, %v235
  %v448 = vmul.f32 %v446, %v236
  %v449 = vtanh.pop %v447
  %v450 = vtanh.pop %v448
  %v451 = vmul.f32 %v449, %v235
  %v452 = vmul.f32 %v450, %v236
  %v453 = vadd.f32 %v451, %v235
  %v454 = vadd.f32 %v452, %v243
  %v455 = vmul.f32 %v453, %v391
  %v456 = vmul.f32 %v453, %v454
  %458 = vrot.lane.b32.xlu0 %v456, 64
  %v459 = vpop.permute.xlu0 %458
  %v461 = vadd.f32 %v455, %v459
  %v462 = vtanh.pop %v461
  %v463 = vmul.f32 %v454, %v462
  %465 = vrot.lane.b32.xlu0 %v463, 64
  %v466 = vpop.permute.xlu0 %465
  %s468 = scalar_lea.vmem %s4, 24
  %469 = vst.msk [vmem:[%s468] sm:$0xff] %vm47, %v466
  %s470 = scalar_lea.vmem [#allocation2], 64
  %v471 = vld [vmem:[%s470] sm:$0xff]
  %v472 = vld [vmem:[%s470 + $0x8] sm:$0xff]
  %v473 = vsel %vm47, %v466, 0
  %475 = vmatpush.msra.mxu0 0.0
  %476 = vmatpush.msra.mxu0 0.0
  %477 = vmatpush.msra.mxu0 0.0
  %478 = vmatpush.msra.mxu0 0.0
  %479 = vmatpush.msra.mxu0 0.0
  %480 = vmatpush.msra.mxu0 0.0
  %481 = vmatpush.msra.mxu0 0.0
  %482 = vmatpush.msra.mxu0 0.0
  %483 = vmatpush.msra.mxu0 %v184
  %484 = vmatpush.msra.mxu0 %v182
  %485 = vmatpush.msra.mxu0 %v180
  %486 = vmatpush.msra.mxu0 %v178
  %487 = vmatpush.msra.mxu0 %v176
  %488 = vmatpush.msra.mxu0 %v174
  %489 = vmatpush.msra.mxu0 %v172
  %490 = vmatpush.msra.mxu0 %v170
  %491 = vmatmul.f32.gmra.mxu0 %v473
  %v492 = vpop.f32.mrf.mxu0
  %v493 = vadd.f32 0.0, %v492
  %494 = vdwg.mxu0
  %495 = vmatpush.msra.mxu0 0.0
  %496 = vmatpush.msra.mxu0 0.0
  %497 = vmatpush.msra.mxu0 0.0
  %498 = vmatpush.msra.mxu0 0.0
  %499 = vmatpush.msra.mxu0 0.0
  %500 = vmatpush.msra.mxu0 0.0
  %501 = vmatpush.msra.mxu0 0.0
  %502 = vmatpush.msra.mxu0 0.0
  %503 = vmatpush.msra.mxu0 %v185
  %504 = vmatpush.msra.mxu0 %v183
  %505 = vmatpush.msra.mxu0 %v181
  %506 = vmatpush.msra.mxu0 %v179
  %507 = vmatpush.msra.mxu0 %v177
  %508 = vmatpush.msra.mxu0 %v175
  %509 = vmatpush.msra.mxu0 %v173
  %510 = vmatpush.msra.mxu0 %v171
  %511 = vmatmul.f32.gmra.mxu0 %v473
  %v512 = vpop.f32.mrf.mxu0
  %v513 = vadd.f32 0.0, %v512
  %514 = vdwg.mxu0
  %v515 = vadd.f32 %v471, %v493
  %v516 = vadd.f32 %v472, %v513
  %v517 = vmul.f32 %v515, %v235
  %v518 = vmul.f32 %v516, %v236
  %v519 = vtanh.pop %v517
  %v520 = vtanh.pop %v518
  %v521 = vmul.f32 %v519, %v235
  %v522 = vmul.f32 %v520, %v236
  %v523 = vadd.f32 %v521, %v235
  %v524 = vadd.f32 %v522, %v243
  %v525 = vmul.f32 %v523, %v461
  %v526 = vmul.f32 %v523, %v524
  %528 = vrot.lane.b32.xlu0 %v526, 64
  %v529 = vpop.permute.xlu0 %528
  %v531 = vadd.f32 %v525, %v529
  %v532 = vtanh.pop %v531
  %v533 = vmul.f32 %v524, %v532
  %535 = vrot.lane.b32.xlu0 %v533, 64
  %v536 = vpop.permute.xlu0 %535
  %s538 = scalar_lea.vmem %s4, 32
  %539 = vst.msk [vmem:[%s538] sm:$0xff] %vm47, %v536
  %s540 = scalar_lea.vmem [#allocation2], 80
  %v541 = vld [vmem:[%s540] sm:$0xff]
  %v542 = vld [vmem:[%s540 + $0x8] sm:$0xff]
  %v543 = vsel %vm47, %v536, 0
  %545 = vmatpush.msra.mxu0 0.0
  %546 = vmatpush.msra.mxu0 0.0
  %547 = vmatpush.msra.mxu0 0.0
  %548 = vmatpush.msra.mxu0 0.0
  %549 = vmatpush.msra.mxu0 0.0
  %550 = vmatpush.msra.mxu0 0.0
  %551 = vmatpush.msra.mxu0 0.0
  %552 = vmatpush.msra.mxu0 0.0
  %553 = vmatpush.msra.mxu0 %v184
  %554 = vmatpush.msra.mxu0 %v182
  %555 = vmatpush.msra.mxu0 %v180
  %556 = vmatpush.msra.mxu0 %v178
  %557 = vmatpush.msra.mxu0 %v176
  %558 = vmatpush.msra.mxu0 %v174
  %559 = vmatpush.msra.mxu0 %v172
  %560 = vmatpush.msra.mxu0 %v170
  %561 = vmatmul.f32.gmra.mxu0 %v543
  %v562 = vpop.f32.mrf.mxu0
  %v563 = vadd.f32 0.0, %v562
  %564 = vdwg.mxu0
  %565 = vmatpush.msra.mxu0 0.0
  %566 = vmatpush.msra.mxu0 0.0
  %567 = vmatpush.msra.mxu0 0.0
  %568 = vmatpush.msra.mxu0 0.0
  %569 = vmatpush.msra.mxu0 0.0
  %570 = vmatpush.msra.mxu0 0.0
  %571 = vmatpush.msra.mxu0 0.0
  %572 = vmatpush.msra.mxu0 0.0
  %573 = vmatpush.msra.mxu0 %v185
  %574 = vmatpush.msra.mxu0 %v183
  %575 = vmatpush.msra.mxu0 %v181
  %576 = vmatpush.msra.mxu0 %v179
  %577 = vmatpush.msra.mxu0 %v177
  %578 = vmatpush.msra.mxu0 %v175
  %579 = vmatpush.msra.mxu0 %v173
  %580 = vmatpush.msra.mxu0 %v171
  %581 = vmatmul.f32.gmra.mxu0 %v543
  %v582 = vpop.f32.mrf.mxu0
  %v583 = vadd.f32 0.0, %v582
  %584 = vdwg.mxu0
  %v585 = vadd.f32 %v541, %v563
  %v586 = vadd.f32 %v542, %v583
  %v587 = vmul.f32 %v585, %v235
  %v588 = vmul.f32 %v586, %v236
  %v589 = vtanh.pop %v587
  %v590 = vtanh.pop %v588
  %v591 = vmul.f32 %v589, %v235
  %v592 = vmul.f32 %v590, %v236
  %v593 = vadd.f32 %v591, %v235
  %v594 = vadd.f32 %v592, %v243
  %v595 = vmul.f32 %v593, %v531
  %v596 = vmul.f32 %v593, %v594
  %598 = vrot.lane.b32.xlu0 %v596, 64
  %v599 = vpop.permute.xlu0 %598
  %v601 = vadd.f32 %v595, %v599
  %v602 = vtanh.pop %v601
  %v603 = vmul.f32 %v594, %v602
  %605 = vrot.lane.b32.xlu0 %v603, 64
  %v606 = vpop.permute.xlu0 %605
  %s608 = scalar_lea.vmem %s4, 40
  %609 = vst.msk [vmem:[%s608] sm:$0xff] %vm47, %v606
  %s610 = scalar_lea.vmem [#allocation2], 96
  %v611 = vld [vmem:[%s610] sm:$0xff]
  %v612 = vld [vmem:[%s610 + $0x8] sm:$0xff]
  %v613 = vsel %vm47, %v606, 0
  %615 = vmatpush.msra.mxu0 0.0
  %616 = vmatpush.msra.mxu0 0.0
  %617 = vmatpush.msra.mxu0 0.0
  %618 = vmatpush.msra.mxu0 0.0
  %619 = vmatpush.msra.mxu0 0.0
  %620 = vmatpush.msra.mxu0 0.0
  %621 = vmatpush.msra.mxu0 0.0
  %622 = vmatpush.msra.mxu0 0.0
  %623 = vmatpush.msra.mxu0 %v184
  %624 = vmatpush.msra.mxu0 %v182
  %625 = vmatpush.msra.mxu0 %v180
  %626 = vmatpush.msra.mxu0 %v178
  %627 = vmatpush.msra.mxu0 %v176
  %628 = vmatpush.msra.mxu0 %v174
  %629 = vmatpush.msra.mxu0 %v172
  %630 = vmatpush.msra.mxu0 %v170
  %631 = vmatmul.f32.gmra.mxu0 %v613
  %v632 = vpop.f32.mrf.mxu0
  %v633 = vadd.f32 0.0, %v632
  %634 = vdwg.mxu0
  %635 = vmatpush.msra.mxu0 0.0
  %636 = vmatpush.msra.mxu0 0.0
  %637 = vmatpush.msra.mxu0 0.0
  %638 = vmatpush.msra.mxu0 0.0
  %639 = vmatpush.msra.mxu0 0.0
  %640 = vmatpush.msra.mxu0 0.0
  %641 = vmatpush.msra.mxu0 0.0
  %642 = vmatpush.msra.mxu0 0.0
  %643 = vmatpush.msra.mxu0 %v185
  %644 = vmatpush.msra.mxu0 %v183
  %645 = vmatpush.msra.mxu0 %v181
  %646 = vmatpush.msra.mxu0 %v179
  %647 = vmatpush.msra.mxu0 %v177
  %648 = vmatpush.msra.mxu0 %v175
  %649 = vmatpush.msra.mxu0 %v173
  %650 = vmatpush.msra.mxu0 %v171
  %651 = vmatmul.f32.gmra.mxu0 %v613
  %v652 = vpop.f32.mrf.mxu0
  %v653 = vadd.f32 0.0, %v652
  %654 = vdwg.mxu0
  %v655 = vadd.f32 %v611, %v633
  %v656 = vadd.f32 %v612, %v653
  %v657 = vmul.f32 %v655, %v235
  %v658 = vmul.f32 %v656, %v236
  %v659 = vtanh.pop %v657
  %v660 = vtanh.pop %v658
  %v661 = vmul.f32 %v659, %v235
  %v662 = vmul.f32 %v660, %v236
  %v663 = vadd.f32 %v661, %v235
  %v664 = vadd.f32 %v662, %v243
  %v665 = vmul.f32 %v663, %v601
  %v666 = vmul.f32 %v663, %v664
  %668 = vrot.lane.b32.xlu0 %v666, 64
  %v669 = vpop.permute.xlu0 %668
  %v671 = vadd.f32 %v665, %v669
  %v672 = vtanh.pop %v671
  %v673 = vmul.f32 %v664, %v672
  %675 = vrot.lane.b32.xlu0 %v673, 64
  %v676 = vpop.permute.xlu0 %675
  %s678 = scalar_lea.vmem %s4, 48
  %679 = vst.msk [vmem:[%s678] sm:$0xff] %vm47, %v676
  %s680 = scalar_lea.vmem [#allocation2], 112
  %v681 = vld [vmem:[%s680] sm:$0xff]
  %v682 = vld [vmem:[%s680 + $0x8] sm:$0xff]
  %v683 = vsel %vm47, %v676, 0
  %685 = vmatpush.msra.mxu0 0.0
  %686 = vmatpush.msra.mxu0 0.0
  %687 = vmatpush.msra.mxu0 0.0
  %688 = vmatpush.msra.mxu0 0.0
  %689 = vmatpush.msra.mxu0 0.0
  %690 = vmatpush.msra.mxu0 0.0
  %691 = vmatpush.msra.mxu0 0.0
  %692 = vmatpush.msra.mxu0 0.0
  %693 = vmatpush.msra.mxu0 %v184
  %694 = vmatpush.msra.mxu0 %v182
  %695 = vmatpush.msra.mxu0 %v180
  %696 = vmatpush.msra.mxu0 %v178
  %697 = vmatpush.msra.mxu0 %v176
  %698 = vmatpush.msra.mxu0 %v174
  %699 = vmatpush.msra.mxu0 %v172
  %700 = vmatpush.msra.mxu0 %v170
  %701 = vmatmul.f32.gmra.mxu0 %v683
  %v702 = vpop.f32.mrf.mxu0
  %v703 = vadd.f32 0.0, %v702
  %704 = vdwg.mxu0
  %705 = vmatpush.msra.mxu0 0.0
  %706 = vmatpush.msra.mxu0 0.0
  %707 = vmatpush.msra.mxu0 0.0
  %708 = vmatpush.msra.mxu0 0.0
  %709 = vmatpush.msra.mxu0 0.0
  %710 = vmatpush.msra.mxu0 0.0
  %711 = vmatpush.msra.mxu0 0.0
  %712 = vmatpush.msra.mxu0 0.0
  %713 = vmatpush.msra.mxu0 %v185
  %714 = vmatpush.msra.mxu0 %v183
  %715 = vmatpush.msra.mxu0 %v181
  %716 = vmatpush.msra.mxu0 %v179
  %717 = vmatpush.msra.mxu0 %v177
  %718 = vmatpush.msra.mxu0 %v175
  %719 = vmatpush.msra.mxu0 %v173
  %720 = vmatpush.msra.mxu0 %v171
  %721 = vmatmul.f32.gmra.mxu0 %v683
  %v722 = vpop.f32.mrf.mxu0
  %v723 = vadd.f32 0.0, %v722
  %724 = vdwg.mxu0
  %v725 = vadd.f32 %v681, %v703
  %v726 = vadd.f32 %v682, %v723
  %v727 = vmul.f32 %v725, %v235
  %v728 = vmul.f32 %v726, %v236
  %v729 = vtanh.pop %v727
  %v730 = vtanh.pop %v728
  %v731 = vmul.f32 %v729, %v235
  %v732 = vmul.f32 %v730, %v236
  %v733 = vadd.f32 %v731, %v235
  %v734 = vadd.f32 %v732, %v243
  %v735 = vmul.f32 %v733, %v671
  %v736 = vmul.f32 %v733, %v734
  %738 = vrot.lane.b32.xlu0 %v736, 64
  %v739 = vpop.permute.xlu0 %738
  %v741 = vadd.f32 %v735, %v739
  %v742 = vtanh.pop %v741
  %v743 = vmul.f32 %v734, %v742
  %745 = vrot.lane.b32.xlu0 %v743, 64
  %v746 = vpop.permute.xlu0 %745
  %s748 = scalar_lea.vmem %s4, 56
  %749 = vst.msk [vmem:[%s748] sm:$0xff] %vm47, %v746
  // Predicated region
  $region18: #{discourse_encoder_forward.2} parent=0 // pred_check
    _
  $region19: #{discourse_encoder_forward.2} parent=0 // pred_check_branch
    %751 = sbr.rel (0) target = $region21
  $region20: #{discourse_encoder_forward.2} parent=0 // pred_region
    _
  $region21: #{discourse_encoder_forward.2} parent=0 // pred_fallthru
    _
  // Predicated region
  $region22: #{discourse_encoder_forward.2} parent=0 // pred_check
    _
  $region23: #{discourse_encoder_forward.2} parent=0 // pred_check_branch
    %753 = sbr.rel (0) target = $region25
  $region24: #{discourse_encoder_forward.2} parent=0 // pred_region
    _
  $region25: #{discourse_encoder_forward.2} parent=0 // pred_fallthru
    _

</llo_original>
